<compile_context>
chip_gen: v7x
topology: tpu7x:2x2x1
jax: 0.10.0
libtpu: 0.0.40
codegen_flags: <defaults>
</compile_context>

<pallas_src>
import jax
import jax.numpy as jnp
from jax.experimental import pallas as pl
from jax.experimental.pallas import tpu as pltpu


def _mlp_kernel(clipA_ref, convA_ref, clipB_ref, convB_ref,
                w1c_ref, w1v_ref, b1_ref, w2_ref, b2_ref, w3_ref, b3_ref,
                outA_ref, outB_ref):
    w1c = w1c_ref[...]
    w1v = w1v_ref[...]
    b1 = b1_ref[...]
    w2 = w2_ref[...]
    b2 = b2_ref[...]
    w3 = w3_ref[...]
    b3 = b3_ref[...]

    def score(clip, conv):
        # Layer 1: Linear(fusion_dim -> 512) + ReLU. The clip/convnext concat is fused as two
        # partial matmuls; bf16 operands on the MXU, f32 accumulation.
        h1 = jnp.dot(clip.astype(jnp.bfloat16), w1c, preferred_element_type=jnp.float32)
        h1 = h1 + jnp.dot(conv.astype(jnp.bfloat16), w1v, preferred_element_type=jnp.float32)
        h1 = jnp.maximum(h1 + b1, 0.0)
        # Layer 2: Linear(512 -> 64) + ReLU, bf16 MXU path with f32 accumulation.
        h2 = jnp.dot(h1.astype(jnp.bfloat16), w2, preferred_element_type=jnp.float32)
        h2 = jnp.maximum(h2 + b2, 0.0)
        # Layer 3: Linear(64 -> 1) on the VPU/XLU (broadcast-mul + lane reduce). Result is a
        # (1, tm) lane-major row so the output store is lane-dense (no masked width-1 column).
        return jnp.sum(h2 * w3, axis=-1)[None, :] + b3   # (1, tm)

    outA_ref[...] = score(clipA_ref[...], convA_ref[...])[None]   # (1, 1, tm)
    outB_ref[...] = score(clipB_ref[...], convB_ref[...])[None]   # (1, 1, tm)


def _score_mlp_pallas(clipA, convA, clipB, convB, params, *, block_m=512):
    """clipX: [N, clip_dim], convX: [N, convnext_dim] -> (scoreA [N,1] f32, scoreB [N,1] f32)."""
    w1c, w1v, b1, w2, b2, w3, b3 = params
    n, clip_dim = clipA.shape
    conv_dim = convA.shape[1]
    fusion_dim = clip_dim + conv_dim

    # Batch tile: each grid step scores tm rows of BOTH A and B (2*tm effective rows), so
    # tm=512 sits in the measured ~85% HBM-roofline regime on v6e. Small/medium batches are
    # split into >=2 tiles (when possible) so both v7x TensorCores get work; 8-row sublane
    # granule. No jnp.pad: grid = cdiv(n, tm), the ragged last input tile only produces
    # garbage in rows that the wrapper slices off.
    tm = min(block_m, max(8, ((pl.cdiv(n, 2) + 7) // 8) * 8))
    grid_m = pl.cdiv(n, tm)

    def const(a):
        # Full-array block with a constant index_map: DMA'd once, VMEM-resident across the grid.
        # (All weights together are ~1.6 MiB, so default double-buffering of these blocks is
        # immaterial against the 48 MiB VMEM budget.)
        return pl.BlockSpec(a.shape, lambda i: (0,) * a.ndim)

    clip_spec = pl.BlockSpec((tm, clip_dim), lambda i: (i, 0))
    conv_spec = pl.BlockSpec((tm, conv_dim), lambda i: (i, 0))
    # Lane-dense output: tile i's scores live in row i as a tm-wide lane vector. The last two
    # block dims equal the full array dims, so any tm (including tiny batches) is layout-legal.
    out_shape = jax.ShapeDtypeStruct((grid_m, 1, tm), jnp.float32)
    out_spec = pl.BlockSpec((1, 1, tm), lambda i: (i, 0, 0))

    flops = 2 * 2 * grid_m * tm * (fusion_dim * 512 + 512 * 64 + 64)
    bytes_accessed = (
        (w1c.size + w1v.size + w2.size) * 2                     # bf16 weights
        + (b1.size + b2.size + w3.size + b3.size) * 4           # f32 biases / head row
        + 2 * n * fusion_dim * clipA.dtype.itemsize             # A and B feature streams
        + 2 * grid_m * tm * 4                                   # scores
    )

    outA, outB = pl.pallas_call(
        _mlp_kernel,
        out_shape=(out_shape, out_shape),
        grid=(grid_m,),
        in_specs=[
            clip_spec, conv_spec, clip_spec, conv_spec,
            const(w1c), const(w1v), const(b1),
            const(w2), const(b2), const(w3), const(b3),
        ],
        out_specs=(out_spec, out_spec),
        compiler_params=pltpu.CompilerParams(
            dimension_semantics=("parallel",),     # megacore-shard batch tiles (v7x)
            vmem_limit_bytes=48 * 1024 * 1024,     # tm=512 f32 A+B tiles double-buffered
                                                   # (~12 MiB) + weights; safe on v7x's 64 MiB
        ),
        cost_estimate=pl.CostEstimate(
            flops=flops, transcendentals=0, bytes_accessed=bytes_accessed),
    )(clipA, convA, clipB, convB, w1c, w1v, b1, w2, b2, w3, b3)

    scoreA = outA.reshape(-1)[:n].reshape(n, 1)
    scoreB = outB.reshape(-1)[:n].reshape(n, 1)
    return scoreA, scoreB


class RewardModelFusionPallas:
    """Pallas port of RewardModel_Fusion: one kernel call scores A and B without ever
    materializing the feature concat or a stacked A/B batch in HBM."""

    def __init__(self, clip_dim=512, convnext_dim=1024, key=jax.random.PRNGKey(0)):
        fusion_dim = clip_dim + convnext_dim
        self.clip_dim = clip_dim
        self.convnext_dim = convnext_dim

        def init_linear(key, fan_in, fan_out):
            # Deterministic init mimicking nn.Linear default: U(-1/sqrt(fan_in), 1/sqrt(fan_in))
            kw, kb = jax.random.split(key)
            bound = 1.0 / jnp.sqrt(jnp.float32(fan_in))
            w = jax.random.uniform(kw, (fan_in, fan_out), jnp.float32, -bound, bound)
            b = jax.random.uniform(kb, (1, fan_out), jnp.float32, -bound, bound)
            return w, b

        k1, k2, k3 = jax.random.split(key, 3)
        w1, b1 = init_linear(k1, fusion_dim, 512)
        w2, b2 = init_linear(k2, 512, 64)
        w3, b3 = init_linear(k3, 64, 1)
        # Pre-split w1 by modality (fuses the feature concat into the kernel); store the two
        # MXU weight matrices in bf16 (halves HBM weight traffic, fast MXU path on all gens;
        # v7x has no native f32/int MXU path). Head weights stay f32 (VPU path).
        w1_clip = w1[:clip_dim].astype(jnp.bfloat16)
        w1_conv = w1[clip_dim:].astype(jnp.bfloat16)
        w2_bf16 = w2.astype(jnp.bfloat16)
        w3_row = w3.T  # [1, 64] row for the VPU dot in layer 3
        self.params = (w1_clip, w1_conv, b1, w2_bf16, b2, w3_row, b3)

    def __call__(self, clipA, convA, clipB, convB):
        # No glue copies: the four feature arrays go straight into the kernel.
        return _score_mlp_pallas(clipA, convA, clipB, convB, self.params)


def _reference(model, clipA, convA, clipB, convB):
    # Reference matches the kernel's bf16 weight/activation quantization (w1, w2, layer-1/2
    # operands) with f32 accumulation. Deviation from the pure-f32 PyTorch module is ~1e-3
    # relative, acceptable for reward scoring.
    w1c, w1v, b1, w2, b2, w3, b3 = model.params

    def mlp(clip, conv):
        h = (jnp.dot(clip.astype(jnp.bfloat16), w1c, preferred_element_type=jnp.float32)
             + jnp.dot(conv.astype(jnp.bfloat16), w1v, preferred_element_type=jnp.float32))
        h = jnp.maximum(h + b1, 0.0)
        h = jnp.dot(h.astype(jnp.bfloat16), w2, preferred_element_type=jnp.float32)
        h = jnp.maximum(h + b2, 0.0)
        return jnp.sum(h * w3, axis=-1, keepdims=True) + b3

    return mlp(clipA, convA), mlp(clipB, convB)


if __name__ == "__main__":
    # Small shapes consistent with the module: batch=8, clip_dim=128, convnext_dim=256.
    batch, clip_dim, convnext_dim = 8, 128, 256
    key = jax.random.PRNGKey(0)
    k_model, ka, kb, kc, kd = jax.random.split(key, 5)

    model = RewardModelFusionPallas(clip_dim=clip_dim, convnext_dim=convnext_dim, key=k_model)

    clipA = jax.random.normal(ka, (batch, clip_dim), jnp.float32)
    convA = jax.random.normal(kb, (batch, convnext_dim), jnp.float32)
    clipB = jax.random.normal(kc, (batch, clip_dim), jnp.float32)
    convB = jax.random.normal(kd, (batch, convnext_dim), jnp.float32)

    scoreA, scoreB = model(clipA, convA, clipB, convB)
    jax.block_until_ready((scoreA, scoreB))

    refA, refB = _reference(model, clipA, convA, clipB, convB)
    assert scoreA.shape == (batch, 1) and scoreB.shape == (batch, 1)
    assert jnp.allclose(scoreA, refA, atol=2e-3, rtol=2e-3), float(jnp.max(jnp.abs(scoreA - refA)))
    assert jnp.allclose(scoreB, refB, atol=2e-3, rtol=2e-3), float(jnp.max(jnp.abs(scoreB - refB)))

    print("KERNEL_OK")
</pallas_src>

<mosaic_0001>
module attributes {stable_mosaic.version = 11 : i64} {
  func.func @_mlp_kernel(%arg0: i32, %arg1: memref<8x128xf32, #tpu.memory_space<vmem>>, %arg2: memref<8x256xf32, #tpu.memory_space<vmem>>, %arg3: memref<8x128xf32, #tpu.memory_space<vmem>>, %arg4: memref<8x256xf32, #tpu.memory_space<vmem>>, %arg5: memref<128x512xbf16, #tpu.memory_space<vmem>>, %arg6: memref<256x512xbf16, #tpu.memory_space<vmem>>, %arg7: memref<1x512xf32, #tpu.memory_space<vmem>>, %arg8: memref<512x64xbf16, #tpu.memory_space<vmem>>, %arg9: memref<1x64xf32, #tpu.memory_space<vmem>>, %arg10: memref<1x64xf32, #tpu.memory_space<vmem>>, %arg11: memref<1x1xf32, #tpu.memory_space<vmem>>, %arg12: memref<1x1x8xf32, #tpu.memory_space<vmem>>, %arg13: memref<1x1x8xf32, #tpu.memory_space<vmem>>) attributes {dimension_semantics = [#tpu.dimension_semantics<parallel>], iteration_bounds = array<i64: 1>, scalar_prefetch = 0 : i64, scratch_operands = 0 : i64, tpu.core_type = #tpu.core_type<tc>, window_params = [{transform_indices = @transform_0, window_bounds = array<i64: 8, 128>}, {transform_indices = @transform_1, window_bounds = array<i64: 8, 256>}, {transform_indices = @transform_2, window_bounds = array<i64: 8, 128>}, {transform_indices = @transform_3, window_bounds = array<i64: 8, 256>}, {pipeline_mode = #tpu.pipeline_mode<synchronous>, transform_indices = @transform_4, window_bounds = array<i64: 128, 512>}, {pipeline_mode = #tpu.pipeline_mode<synchronous>, transform_indices = @transform_5, window_bounds = array<i64: 256, 512>}, {pipeline_mode = #tpu.pipeline_mode<synchronous>, transform_indices = @transform_6, window_bounds = array<i64: 1, 512>}, {pipeline_mode = #tpu.pipeline_mode<synchronous>, transform_indices = @transform_7, window_bounds = array<i64: 512, 64>}, {pipeline_mode = #tpu.pipeline_mode<synchronous>, transform_indices = @transform_8, window_bounds = array<i64: 1, 64>}, {pipeline_mode = #tpu.pipeline_mode<synchronous>, transform_indices = @transform_9, window_bounds = array<i64: 1, 64>}, {pipeline_mode = #tpu.pipeline_mode<synchronous>, transform_indices = @transform_10, window_bounds = array<i64: 1, 1>}, {transform_indices = @transform_11, window_bounds = array<i64: 1, 1, 8>}, {transform_indices = @transform_12, window_bounds = array<i64: 1, 1, 8>}]} {
    %c0 = arith.constant 0 : index
    %c0_0 = arith.constant 0 : index
    %0 = vector.load %arg5[%c0, %c0_0] : memref<128x512xbf16, #tpu.memory_space<vmem>>, vector<128x512xbf16>
    %c0_1 = arith.constant 0 : index
    %c0_2 = arith.constant 0 : index
    %1 = vector.load %arg6[%c0_1, %c0_2] : memref<256x512xbf16, #tpu.memory_space<vmem>>, vector<256x512xbf16>
    %c0_3 = arith.constant 0 : index
    %c0_4 = arith.constant 0 : index
    %2 = vector.load %arg7[%c0_3, %c0_4] : memref<1x512xf32, #tpu.memory_space<vmem>>, vector<1x512xf32>
    %c0_5 = arith.constant 0 : index
    %c0_6 = arith.constant 0 : index
    %3 = vector.load %arg8[%c0_5, %c0_6] : memref<512x64xbf16, #tpu.memory_space<vmem>>, vector<512x64xbf16>
    %c0_7 = arith.constant 0 : index
    %c0_8 = arith.constant 0 : index
    %4 = vector.load %arg9[%c0_7, %c0_8] : memref<1x64xf32, #tpu.memory_space<vmem>>, vector<1x64xf32>
    %c0_9 = arith.constant 0 : index
    %c0_10 = arith.constant 0 : index
    %5 = vector.load %arg10[%c0_9, %c0_10] : memref<1x64xf32, #tpu.memory_space<vmem>>, vector<1x64xf32>
    %c0_11 = arith.constant 0 : index
    %c0_12 = arith.constant 0 : index
    %6 = vector.load %arg11[%c0_11, %c0_12] : memref<1x1xf32, #tpu.memory_space<vmem>>, vector<1x1xf32>
    %c0_13 = arith.constant 0 : index
    %c0_14 = arith.constant 0 : index
    %7 = vector.load %arg1[%c0_13, %c0_14] : memref<8x128xf32, #tpu.memory_space<vmem>>, vector<8x128xf32>
    %c0_15 = arith.constant 0 : index
    %c0_16 = arith.constant 0 : index
    %8 = vector.load %arg2[%c0_15, %c0_16] : memref<8x256xf32, #tpu.memory_space<vmem>>, vector<8x256xf32>
    %9 = arith.truncf %7 : vector<8x128xf32> to vector<8x128xbf16>
    %cst = arith.constant dense<0.000000e+00> : vector<8x512xf32>
    %10 = tpu.matmul %9, %0, %cst {dimension_numbers = #tpu.dot_dimension_numbers<[1], [0], [0], [1], [0, 0, 1, 1], [], []>} : vector<8x128xbf16>, vector<128x512xbf16>, vector<8x512xf32> -> vector<8x512xf32>
    %11 = arith.truncf %8 : vector<8x256xf32> to vector<8x256xbf16>
    %cst_17 = arith.constant dense<0.000000e+00> : vector<8x512xf32>
    %12 = tpu.matmul %11, %1, %cst_17 {dimension_numbers = #tpu.dot_dimension_numbers<[1], [0], [0], [1], [0, 0, 1, 1], [], []>} : vector<8x256xbf16>, vector<256x512xbf16>, vector<8x512xf32> -> vector<8x512xf32>
    %13 = arith.addf %10, %12 : vector<8x512xf32>
    %14 = vector.broadcast %2 : vector<1x512xf32> to vector<8x512xf32>
    %15 = arith.addf %13, %14 : vector<8x512xf32>
    %cst_18 = arith.constant 0.000000e+00 : f32
    %16 = vector.broadcast %cst_18 : f32 to vector<8x512xf32>
    %17 = arith.maximumf %15, %16 : vector<8x512xf32>
    %18 = arith.truncf %17 : vector<8x512xf32> to vector<8x512xbf16>
    %cst_19 = arith.constant dense<0.000000e+00> : vector<8x64xf32>
    %19 = tpu.matmul %18, %3, %cst_19 {dimension_numbers = #tpu.dot_dimension_numbers<[1], [0], [0], [1], [0, 0, 1, 1], [], []>} : vector<8x512xbf16>, vector<512x64xbf16>, vector<8x64xf32> -> vector<8x64xf32>
    %20 = vector.broadcast %4 : vector<1x64xf32> to vector<8x64xf32>
    %21 = arith.addf %19, %20 : vector<8x64xf32>
    %cst_20 = arith.constant 0.000000e+00 : f32
    %22 = vector.broadcast %cst_20 : f32 to vector<8x64xf32>
    %23 = arith.maximumf %21, %22 : vector<8x64xf32>
    %24 = vector.broadcast %5 : vector<1x64xf32> to vector<8x64xf32>
    %25 = arith.mulf %23, %24 : vector<8x64xf32>
    %cst_21 = arith.constant dense<0.000000e+00> : vector<8xf32>
    %26 = vector.multi_reduction <add>, %25, %cst_21 [1] : vector<8x64xf32> to vector<8xf32>
    %27 = vector.shape_cast %26 : vector<8xf32> to vector<1x8xf32>
    %28 = vector.broadcast %6 : vector<1x1xf32> to vector<1x8xf32>
    %29 = arith.addf %27, %28 : vector<1x8xf32>
    %30 = vector.shape_cast %29 : vector<1x8xf32> to vector<1x1x8xf32>
    %c0_22 = arith.constant 0 : index
    %c0_23 = arith.constant 0 : index
    %c0_24 = arith.constant 0 : index
    %31 = vector.load %arg12[%c0_22, %c0_23, %c0_24] : memref<1x1x8xf32, #tpu.memory_space<vmem>>, vector<1x1x8xf32>
    tpu.vector_store %arg12[%c0_22, %c0_23, %c0_24], %30 {strides = array<i32>} : memref<1x1x8xf32, #tpu.memory_space<vmem>>, vector<1x1x8xf32>,
    %c0_25 = arith.constant 0 : index
    %c0_26 = arith.constant 0 : index
    %32 = vector.load %arg3[%c0_25, %c0_26] : memref<8x128xf32, #tpu.memory_space<vmem>>, vector<8x128xf32>
    %c0_27 = arith.constant 0 : index
    %c0_28 = arith.constant 0 : index
    %33 = vector.load %arg4[%c0_27, %c0_28] : memref<8x256xf32, #tpu.memory_space<vmem>>, vector<8x256xf32>
    %34 = arith.truncf %32 : vector<8x128xf32> to vector<8x128xbf16>
    %cst_29 = arith.constant dense<0.000000e+00> : vector<8x512xf32>
    %35 = tpu.matmul %34, %0, %cst_29 {dimension_numbers = #tpu.dot_dimension_numbers<[1], [0], [0], [1], [0, 0, 1, 1], [], []>} : vector<8x128xbf16>, vector<128x512xbf16>, vector<8x512xf32> -> vector<8x512xf32>
    %36 = arith.truncf %33 : vector<8x256xf32> to vector<8x256xbf16>
    %cst_30 = arith.constant dense<0.000000e+00> : vector<8x512xf32>
    %37 = tpu.matmul %36, %1, %cst_30 {dimension_numbers = #tpu.dot_dimension_numbers<[1], [0], [0], [1], [0, 0, 1, 1], [], []>} : vector<8x256xbf16>, vector<256x512xbf16>, vector<8x512xf32> -> vector<8x512xf32>
    %38 = arith.addf %35, %37 : vector<8x512xf32>
    %39 = vector.broadcast %2 : vector<1x512xf32> to vector<8x512xf32>
    %40 = arith.addf %38, %39 : vector<8x512xf32>
    %cst_31 = arith.constant 0.000000e+00 : f32
    %41 = vector.broadcast %cst_31 : f32 to vector<8x512xf32>
    %42 = arith.maximumf %40, %41 : vector<8x512xf32>
    %43 = arith.truncf %42 : vector<8x512xf32> to vector<8x512xbf16>
    %cst_32 = arith.constant dense<0.000000e+00> : vector<8x64xf32>
    %44 = tpu.matmul %43, %3, %cst_32 {dimension_numbers = #tpu.dot_dimension_numbers<[1], [0], [0], [1], [0, 0, 1, 1], [], []>} : vector<8x512xbf16>, vector<512x64xbf16>, vector<8x64xf32> -> vector<8x64xf32>
    %45 = vector.broadcast %4 : vector<1x64xf32> to vector<8x64xf32>
    %46 = arith.addf %44, %45 : vector<8x64xf32>
    %cst_33 = arith.constant 0.000000e+00 : f32
    %47 = vector.broadcast %cst_33 : f32 to vector<8x64xf32>
    %48 = arith.maximumf %46, %47 : vector<8x64xf32>
    %49 = vector.broadcast %5 : vector<1x64xf32> to vector<8x64xf32>
    %50 = arith.mulf %48, %49 : vector<8x64xf32>
    %cst_34 = arith.constant dense<0.000000e+00> : vector<8xf32>
    %51 = vector.multi_reduction <add>, %50, %cst_34 [1] : vector<8x64xf32> to vector<8xf32>
    %52 = vector.shape_cast %51 : vector<8xf32> to vector<1x8xf32>
    %53 = vector.broadcast %6 : vector<1x1xf32> to vector<1x8xf32>
    %54 = arith.addf %52, %53 : vector<1x8xf32>
    %55 = vector.shape_cast %54 : vector<1x8xf32> to vector<1x1x8xf32>
    %c0_35 = arith.constant 0 : index
    %c0_36 = arith.constant 0 : index
    %c0_37 = arith.constant 0 : index
    %56 = vector.load %arg13[%c0_35, %c0_36, %c0_37] : memref<1x1x8xf32, #tpu.memory_space<vmem>>, vector<1x1x8xf32>
    tpu.vector_store %arg13[%c0_35, %c0_36, %c0_37], %55 {strides = array<i32>} : memref<1x1x8xf32, #tpu.memory_space<vmem>>, vector<1x1x8xf32>,
    return
  }
  func.func @transform_0(%arg0: i32) -> (i32, i32) {
    %c0_i32 = arith.constant 0 : i32
    %c0_i32_0 = arith.constant 0 : i32
    return %arg0, %c0_i32 : i32, i32
  }
  func.func @transform_1(%arg0: i32) -> (i32, i32) {
    %c0_i32 = arith.constant 0 : i32
    %c0_i32_0 = arith.constant 0 : i32
    return %arg0, %c0_i32 : i32, i32
  }
  func.func @transform_2(%arg0: i32) -> (i32, i32) {
    %c0_i32 = arith.constant 0 : i32
    %c0_i32_0 = arith.constant 0 : i32
    return %arg0, %c0_i32 : i32, i32
  }
  func.func @transform_3(%arg0: i32) -> (i32, i32) {
    %c0_i32 = arith.constant 0 : i32
    %c0_i32_0 = arith.constant 0 : i32
    return %arg0, %c0_i32 : i32, i32
  }
  func.func @transform_4(%arg0: i32) -> (i32, i32) {
    %c0_i32 = arith.constant 0 : i32
    %c0_i32_0 = arith.constant 0 : i32
    %c0_i32_1 = arith.constant 0 : i32
    return %c0_i32, %c0_i32_0 : i32, i32
  }
  func.func @transform_5(%arg0: i32) -> (i32, i32) {
    %c0_i32 = arith.constant 0 : i32
    %c0_i32_0 = arith.constant 0 : i32
    %c0_i32_1 = arith.constant 0 : i32
    return %c0_i32, %c0_i32_0 : i32, i32
  }
  func.func @transform_6(%arg0: i32) -> (i32, i32) {
    %c0_i32 = arith.constant 0 : i32
    %c0_i32_0 = arith.constant 0 : i32
    %c0_i32_1 = arith.constant 0 : i32
    return %c0_i32, %c0_i32_0 : i32, i32
  }
  func.func @transform_7(%arg0: i32) -> (i32, i32) {
    %c0_i32 = arith.constant 0 : i32
    %c0_i32_0 = arith.constant 0 : i32
    %c0_i32_1 = arith.constant 0 : i32
    return %c0_i32, %c0_i32_0 : i32, i32
  }
  func.func @transform_8(%arg0: i32) -> (i32, i32) {
    %c0_i32 = arith.constant 0 : i32
    %c0_i32_0 = arith.constant 0 : i32
    %c0_i32_1 = arith.constant 0 : i32
    return %c0_i32, %c0_i32_0 : i32, i32
  }
  func.func @transform_9(%arg0: i32) -> (i32, i32) {
    %c0_i32 = arith.constant 0 : i32
    %c0_i32_0 = arith.constant 0 : i32
    %c0_i32_1 = arith.constant 0 : i32
    return %c0_i32, %c0_i32_0 : i32, i32
  }
  func.func @transform_10(%arg0: i32) -> (i32, i32) {
    %c0_i32 = arith.constant 0 : i32
    %c0_i32_0 = arith.constant 0 : i32
    %c0_i32_1 = arith.constant 0 : i32
    return %c0_i32, %c0_i32_0 : i32, i32
  }
  func.func @transform_11(%arg0: i32) -> (i32, i32, i32) {
    %c0_i32 = arith.constant 0 : i32
    %c0_i32_0 = arith.constant 0 : i32
    %c0_i32_1 = arith.constant 0 : i32
    return %arg0, %c0_i32, %c0_i32_0 : i32, i32, i32
  }
  func.func @transform_12(%arg0: i32) -> (i32, i32, i32) {
    %c0_i32 = arith.constant 0 : i32
    %c0_i32_0 = arith.constant 0 : i32
    %c0_i32_1 = arith.constant 0 : i32
    return %arg0, %c0_i32, %c0_i32_0 : i32, i32, i32
  }
}

</mosaic_0001>

<llo_original>
// kernel: tpu_custom_call.1
$region0: #{tpu_custom_call.1}
  #allocation0 [shape = 'u32[]', space=smem, size = 0x4, offset = 0x4, fixed_abs, tag = 'smem constant byte address 0x4 - core index']
  #allocation1 [shape = 'u32[144,128]{1,0:T(1,128)}', space=vmem, size = 0x12000, scoped, tag = 'internal scratch']
  #allocation2 [shape = 'f32[1,1]{1,0:T(1,128)S(1)}', space=vmem, size = 0x200, scoped, tag = 'scoped memory for tpu_custom_call.1']
  %s0 = inlined_call_operand.vmem [shape: f32[8,128], index: 0, kind: input, shape index: {}]
  %s1 = inlined_call_operand.vmem [shape: f32[8,256], index: 1, kind: input, shape index: {}]
  %s2 = inlined_call_operand.vmem [shape: f32[8,128], index: 2, kind: input, shape index: {}]
  %s3 = inlined_call_operand.vmem [shape: f32[8,256], index: 3, kind: input, shape index: {}]
  %s4 = inlined_call_operand.vmem [shape: bf16[128,512], index: 4, kind: input, shape index: {}]
  %s5 = inlined_call_operand.hbm [shape: bf16[256,512], index: 5, kind: input, shape index: {}]
  %s6 = inlined_call_operand.vmem [shape: f32[1,512], index: 6, kind: input, shape index: {}]
  %s7 = inlined_call_operand.vmem [shape: bf16[512,64], index: 7, kind: input, shape index: {}]
  %s8 = inlined_call_operand.vmem [shape: f32[1,64], index: 8, kind: input, shape index: {}]
  %s9 = inlined_call_operand.vmem [shape: f32[1,64], index: 9, kind: input, shape index: {}]
  %s10 = inlined_call_operand.<no memory space> [shape: f32[1,1], index: 10, kind: input, shape index: {}]
  %s11 = inlined_call_operand.hbm [shape: f32[1,1,8], index: 11, kind: output, shape index: {0}]
  %s12 = inlined_call_operand.hbm [shape: f32[1,1,8], index: 12, kind: output, shape index: {1}]
  %13 = xla_tuple %s11, %s12
  %s14 = sld [smem:[#allocation0]]
  $region66: #{tpu_custom_call.1} parent=0
    _
  %s16 = ssub.s32 1, %s14
  %s17 = scalar_select 0, %s16, %s14
  %v18 = vstv %s10
  %19 = vst [vmem:[#allocation2] sm:$0x1] %v18
  $region1: #{tpu_custom_call.1} parent=0
    #allocation3 [shape = 'u8[262144]{0}', space=vmem, size = 0x40000, scoped, tag = 'input window, operand 5, single buffered']
    #allocation4 [shape = 's32[1]{0}', space=sflag, size = 0x4, scoped, tag = 'scoped memory for tpu_custom_call.1']
    #allocation5 [shape = 's32[1]{0}', space=sflag, size = 0x4, scoped, tag = 'scoped memory for tpu_custom_call.1']
    #allocation6 [shape = 'u8[512]{0}', space=vmem, size = 0x400, scoped, tag = 'output window, operand 0, single buffered']
    #allocation7 [shape = 'u8[512]{0}', space=vmem, size = 0x400, scoped, tag = 'output window, operand 1, single buffered']
    #allocation8 [shape = 's32[1]{0}', space=sflag, size = 0x4, scoped, tag = 'scoped memory for tpu_custom_call.1']
    %20 = vsyncpa [#allocation4], 0
    %21 = vsyncpa [#allocation5], 0
    %22 = vsyncpa [#allocation8], 0
    // Predicated region
    $region2: #{tpu_custom_call.1} parent=1 // pred_check
      _
    $region3: #{tpu_custom_call.1} parent=1 // pred_check_branch
      %24 = sbr.rel (0) target = $region5
    $region4: #{tpu_custom_call.1} parent=1 // pred_region
      _
    $region5: #{tpu_custom_call.1} parent=1 // pred_fallthru
      _
    // Predicated region
    $region6: #{tpu_custom_call.1} parent=1 // pred_check
      _
    $region7: #{tpu_custom_call.1} parent=1 // pred_check_branch
      %26 = sbr.rel (0) target = $region9
    $region8: #{tpu_custom_call.1} parent=1 // pred_region
      _
    $region9: #{tpu_custom_call.1} parent=1 // pred_fallthru
      _
    // Predicated region
    $region10: #{tpu_custom_call.1} parent=1 // pred_check
      _
    $region11: #{tpu_custom_call.1} parent=1 // pred_check_branch
      %28 = sbr.rel (0) target = $region13
    $region12: #{tpu_custom_call.1} parent=1 // pred_region
      _
    $region13: #{tpu_custom_call.1} parent=1 // pred_fallthru
      _
    // Predicated region
    $region14: #{tpu_custom_call.1} parent=1 // pred_check
      _
    $region15: #{tpu_custom_call.1} parent=1 // pred_check_branch
      %30 = sbr.rel (0) target = $region17
    $region16: #{tpu_custom_call.1} parent=1 // pred_region
      _
    $region17: #{tpu_custom_call.1} parent=1 // pred_fallthru
      _
    // Predicated region
    $region18: #{tpu_custom_call.1} parent=1 // pred_check
      _
    $region19: #{tpu_custom_call.1} parent=1 // pred_check_branch
      %32 = sbr.rel (0) target = $region21
    $region20: #{tpu_custom_call.1} parent=1 // pred_region
      _
    $region21: #{tpu_custom_call.1} parent=1 // pred_fallthru
      _
    // Predicated region
    $region22: #{tpu_custom_call.1} parent=1 // pred_check
      _
    $region23: #{tpu_custom_call.1} parent=1 // pred_check_branch
      %34 = sbr.rel (0) target = $region25
    $region24: #{tpu_custom_call.1} parent=1 // pred_region
      %s36 = ssub.s32 8192, 8192
      %37 = vsyncadd [#allocation4], %s36
      %s38 = sshll.u32 [#allocation3], 4
      %s39 = int_to_ptr.vmem [resolvable:$true] %s38
      %44 = dma.hbm_to_vmem [thread:$0]  %s5, 8192, %s39, [#allocation4], 256, 256, 16
    $region25: #{tpu_custom_call.1} parent=1 // pred_fallthru
      _
    // Predicated region
    $region26: #{tpu_custom_call.1} parent=1 // pred_check
      _
    $region27: #{tpu_custom_call.1} parent=1 // pred_check_branch
      %46 = sbr.rel (0) target = $region29
    $region28: #{tpu_custom_call.1} parent=1 // pred_region
      _
    $region29: #{tpu_custom_call.1} parent=1 // pred_fallthru
      _
    // Predicated region
    $region30: #{tpu_custom_call.1} parent=1 // pred_check
      _
    $region31: #{tpu_custom_call.1} parent=1 // pred_check_branch
      %48 = sbr.rel (0) target = $region33
    $region32: #{tpu_custom_call.1} parent=1 // pred_region
      _
    $region33: #{tpu_custom_call.1} parent=1 // pred_fallthru
      _
    // Predicated region
    $region34: #{tpu_custom_call.1} parent=1 // pred_check
      _
    $region35: #{tpu_custom_call.1} parent=1 // pred_check_branch
      %50 = sbr.rel (0) target = $region37
    $region36: #{tpu_custom_call.1} parent=1 // pred_region
      _
    $region37: #{tpu_custom_call.1} parent=1 // pred_fallthru
      _
    // Predicated region
    $region38: #{tpu_custom_call.1} parent=1 // pred_check
      _
    $region39: #{tpu_custom_call.1} parent=1 // pred_check_branch
      %52 = sbr.rel (0) target = $region41
    $region40: #{tpu_custom_call.1} parent=1 // pred_region
      _
    $region41: #{tpu_custom_call.1} parent=1 // pred_fallthru
      _
    // Predicated region
    $region42: #{tpu_custom_call.1} parent=1 // pred_check
      _
    $region43: #{tpu_custom_call.1} parent=1 // pred_check_branch
      %54 = sbr.rel (0) target = $region45
    $region44: #{tpu_custom_call.1} parent=1 // pred_region
      _
    $region45: #{tpu_custom_call.1} parent=1 // pred_fallthru
      _
    // Predicated region
    $region46: #{tpu_custom_call.1} parent=1 // pred_check
      _
    $region47: #{tpu_custom_call.1} parent=1 // pred_check_branch
      %56 = sbr.rel (0) target = $region49
    $region48: #{tpu_custom_call.1} parent=1 // pred_region
      %57 = dma.done [#allocation4], 8192
    $region49: #{tpu_custom_call.1} parent=1 // pred_fallthru
      _
    %v59 = vld [vmem:[%s4] sm:$0xff]
    %v60 = vld [vmem:[%s4 + $0x8] sm:$0xff]
    %v61 = vld [vmem:[%s4 + $0x10] sm:$0xff]
    %v62 = vld [vmem:[%s4 + $0x18] sm:$0xff]
    %v63 = vld [vmem:[%s4 + $0x20] sm:$0xff]
    %v64 = vld [vmem:[%s4 + $0x28] sm:$0xff]
    %v65 = vld [vmem:[%s4 + $0x30] sm:$0xff]
    %v66 = vld [vmem:[%s4 + $0x38] sm:$0xff]
    %v67 = vld [vmem:[%s4 + $0x40] sm:$0xff]
    %v68 = vld [vmem:[%s4 + $0x48] sm:$0xff]
    %v69 = vld [vmem:[%s4 + $0x50] sm:$0xff]
    %v70 = vld [vmem:[%s4 + $0x58] sm:$0xff]
    %v71 = vld [vmem:[%s4 + $0x60] sm:$0xff]
    %v72 = vld [vmem:[%s4 + $0x68] sm:$0xff]
    %v73 = vld [vmem:[%s4 + $0x70] sm:$0xff]
    %v74 = vld [vmem:[%s4 + $0x78] sm:$0xff]
    %v75 = vld [vmem:[%s4 + $0x80] sm:$0xff]
    %v76 = vld [vmem:[%s4 + $0x88] sm:$0xff]
    %v77 = vld [vmem:[%s4 + $0x90] sm:$0xff]
    %v78 = vld [vmem:[%s4 + $0x98] sm:$0xff]
    %v79 = vld [vmem:[%s4 + $0xa0] sm:$0xff]
    %v80 = vld [vmem:[%s4 + $0xa8] sm:$0xff]
    %v81 = vld [vmem:[%s4 + $0xb0] sm:$0xff]
    %v82 = vld [vmem:[%s4 + $0xb8] sm:$0xff]
    %v83 = vld [vmem:[%s4 + $0xc0] sm:$0xff]
    %v84 = vld [vmem:[%s4 + $0xc8] sm:$0xff]
    %v85 = vld [vmem:[%s4 + $0xd0] sm:$0xff]
    %v86 = vld [vmem:[%s4 + $0xd8] sm:$0xff]
    %v87 = vld [vmem:[%s4 + $0xe0] sm:$0xff]
    %v88 = vld [vmem:[%s4 + $0xe8] sm:$0xff]
    %v89 = vld [vmem:[%s4 + $0xf0] sm:$0xff]
    %v90 = vld [vmem:[%s4 + $0xf8] sm:$0xff]
    %v91 = vld [vmem:[#allocation3] sm:$0xff]
    %v92 = vld [vmem:[#allocation3 + $0x8] sm:$0xff]
    %v93 = vld [vmem:[#allocation3 + $0x10] sm:$0xff]
    %v94 = vld [vmem:[#allocation3 + $0x18] sm:$0xff]
    %v95 = vld [vmem:[#allocation3 + $0x20] sm:$0xff]
    %v96 = vld [vmem:[#allocation3 + $0x28] sm:$0xff]
    %v97 = vld [vmem:[#allocation3 + $0x30] sm:$0xff]
    %v98 = vld [vmem:[#allocation3 + $0x38] sm:$0xff]
    %v99 = vld [vmem:[#allocation3 + $0x40] sm:$0xff]
    %v100 = vld [vmem:[#allocation3 + $0x48] sm:$0xff]
    %v101 = vld [vmem:[#allocation3 + $0x50] sm:$0xff]
    %v102 = vld [vmem:[#allocation3 + $0x58] sm:$0xff]
    %v103 = vld [vmem:[#allocation3 + $0x60] sm:$0xff]
    %v104 = vld [vmem:[#allocation3 + $0x68] sm:$0xff]
    %v105 = vld [vmem:[#allocation3 + $0x70] sm:$0xff]
    %v106 = vld [vmem:[#allocation3 + $0x78] sm:$0xff]
    %v107 = vld [vmem:[#allocation3 + $0x80] sm:$0xff]
    %v108 = vld [vmem:[#allocation3 + $0x88] sm:$0xff]
    %v109 = vld [vmem:[#allocation3 + $0x90] sm:$0xff]
    %v110 = vld [vmem:[#allocation3 + $0x98] sm:$0xff]
    %v111 = vld [vmem:[#allocation3 + $0xa0] sm:$0xff]
    %v112 = vld [vmem:[#allocation3 + $0xa8] sm:$0xff]
    %v113 = vld [vmem:[#allocation3 + $0xb0] sm:$0xff]
    %v114 = vld [vmem:[#allocation3 + $0xb8] sm:$0xff]
    %v115 = vld [vmem:[#allocation3 + $0xc0] sm:$0xff]
    %v116 = vld [vmem:[#allocation3 + $0xc8] sm:$0xff]
    %v117 = vld [vmem:[#allocation3 + $0xd0] sm:$0xff]
    %v118 = vld [vmem:[#allocation3 + $0xd8] sm:$0xff]
    %v119 = vld [vmem:[#allocation3 + $0xe0] sm:$0xff]
    %v120 = vld [vmem:[#allocation3 + $0xe8] sm:$0xff]
    %v121 = vld [vmem:[#allocation3 + $0xf0] sm:$0xff]
    %v122 = vld [vmem:[#allocation3 + $0xf8] sm:$0xff]
    %v123 = vld [vmem:[#allocation3 + $0x100] sm:$0xff]
    %v124 = vld [vmem:[#allocation3 + $0x108] sm:$0xff]
    %v125 = vld [vmem:[#allocation3 + $0x110] sm:$0xff]
    %v126 = vld [vmem:[#allocation3 + $0x118] sm:$0xff]
    %v127 = vld [vmem:[#allocation3 + $0x120] sm:$0xff]
    %v128 = vld [vmem:[#allocation3 + $0x128] sm:$0xff]
    %v129 = vld [vmem:[#allocation3 + $0x130] sm:$0xff]
    %v130 = vld [vmem:[#allocation3 + $0x138] sm:$0xff]
    %v131 = vld [vmem:[#allocation3 + $0x140] sm:$0xff]
    %v132 = vld [vmem:[#allocation3 + $0x148] sm:$0xff]
    %v133 = vld [vmem:[#allocation3 + $0x150] sm:$0xff]
    %v134 = vld [vmem:[#allocation3 + $0x158] sm:$0xff]
    %v135 = vld [vmem:[#allocation3 + $0x160] sm:$0xff]
    %v136 = vld [vmem:[#allocation3 + $0x168] sm:$0xff]
    %v137 = vld [vmem:[#allocation3 + $0x170] sm:$0xff]
    %v138 = vld [vmem:[#allocation3 + $0x178] sm:$0xff]
    %v139 = vld [vmem:[#allocation3 + $0x180] sm:$0xff]
    %v140 = vld [vmem:[#allocation3 + $0x188] sm:$0xff]
    %v141 = vld [vmem:[#allocation3 + $0x190] sm:$0xff]
    %v142 = vld [vmem:[#allocation3 + $0x198] sm:$0xff]
    %v143 = vld [vmem:[#allocation3 + $0x1a0] sm:$0xff]
    %v144 = vld [vmem:[#allocation3 + $0x1a8] sm:$0xff]
    %v145 = vld [vmem:[#allocation3 + $0x1b0] sm:$0xff]
    %v146 = vld [vmem:[#allocation3 + $0x1b8] sm:$0xff]
    %v147 = vld [vmem:[#allocation3 + $0x1c0] sm:$0xff]
    %v148 = vld [vmem:[#allocation3 + $0x1c8] sm:$0xff]
    %v149 = vld [vmem:[#allocation3 + $0x1d0] sm:$0xff]
    %v150 = vld [vmem:[#allocation3 + $0x1d8] sm:$0xff]
    %v151 = vld [vmem:[#allocation3 + $0x1e0] sm:$0xff]
    %v152 = vld [vmem:[#allocation3 + $0x1e8] sm:$0xff]
    %v153 = vld [vmem:[#allocation3 + $0x1f0] sm:$0xff]
    %v154 = vld [vmem:[#allocation3 + $0x1f8] sm:$0xff]
    %v155 = vld [vmem:[%s6] sm:$0xf]
    %v156 = vld [vmem:[%s7] sm:$0xf]
    %v157 = vld [vmem:[%s7 + $0x4] sm:$0xf]
    %v158 = vld [vmem:[%s7 + $0x8] sm:$0xf]
    %v159 = vld [vmem:[%s7 + $0xc] sm:$0xf]
    %v160 = vld [vmem:[%s7 + $0x10] sm:$0xf]
    %v161 = vld [vmem:[%s7 + $0x14] sm:$0xf]
    %v162 = vld [vmem:[%s7 + $0x18] sm:$0xf]
    %v163 = vld [vmem:[%s7 + $0x1c] sm:$0xf]
    %v164 = vld [vmem:[%s7 + $0x20] sm:$0xf]
    %v165 = vld [vmem:[%s7 + $0x24] sm:$0xf]
    %v166 = vld [vmem:[%s7 + $0x28] sm:$0xf]
    %v167 = vld [vmem:[%s7 + $0x2c] sm:$0xf]
    %v168 = vld [vmem:[%s7 + $0x30] sm:$0xf]
    %v169 = vld [vmem:[%s7 + $0x34] sm:$0xf]
    %v170 = vld [vmem:[%s7 + $0x38] sm:$0xf]
    %v171 = vld [vmem:[%s7 + $0x3c] sm:$0xf]
    %v172 = vld [vmem:[%s7 + $0x40] sm:$0xf]
    %v173 = vld [vmem:[%s7 + $0x44] sm:$0xf]
    %v174 = vld [vmem:[%s7 + $0x48] sm:$0xf]
    %v175 = vld [vmem:[%s7 + $0x4c] sm:$0xf]
    %v176 = vld [vmem:[%s7 + $0x50] sm:$0xf]
    %v177 = vld [vmem:[%s7 + $0x54] sm:$0xf]
    %v178 = vld [vmem:[%s7 + $0x58] sm:$0xf]
    %v179 = vld [vmem:[%s7 + $0x5c] sm:$0xf]
    %v180 = vld [vmem:[%s7 + $0x60] sm:$0xf]
    %v181 = vld [vmem:[%s7 + $0x64] sm:$0xf]
    %v182 = vld [vmem:[%s7 + $0x68] sm:$0xf]
    %v183 = vld [vmem:[%s7 + $0x6c] sm:$0xf]
    %v184 = vld [vmem:[%s7 + $0x70] sm:$0xf]
    %v185 = vld [vmem:[%s7 + $0x74] sm:$0xf]
    %v186 = vld [vmem:[%s7 + $0x78] sm:$0xf]
    %v187 = vld [vmem:[%s7 + $0x7c] sm:$0xf]
    %v188 = vld [vmem:[%s7 + $0x80] sm:$0xf]
    %v189 = vld [vmem:[%s7 + $0x84] sm:$0xf]
    %v190 = vld [vmem:[%s7 + $0x88] sm:$0xf]
    %v191 = vld [vmem:[%s7 + $0x8c] sm:$0xf]
    %v192 = vld [vmem:[%s7 + $0x90] sm:$0xf]
    %v193 = vld [vmem:[%s7 + $0x94] sm:$0xf]
    %v194 = vld [vmem:[%s7 + $0x98] sm:$0xf]
    %v195 = vld [vmem:[%s7 + $0x9c] sm:$0xf]
    %v196 = vld [vmem:[%s7 + $0xa0] sm:$0xf]
    %v197 = vld [vmem:[%s7 + $0xa4] sm:$0xf]
    %v198 = vld [vmem:[%s7 + $0xa8] sm:$0xf]
    %v199 = vld [vmem:[%s7 + $0xac] sm:$0xf]
    %v200 = vld [vmem:[%s7 + $0xb0] sm:$0xf]
    %v201 = vld [vmem:[%s7 + $0xb4] sm:$0xf]
    %v202 = vld [vmem:[%s7 + $0xb8] sm:$0xf]
    %v203 = vld [vmem:[%s7 + $0xbc] sm:$0xf]
    %v204 = vld [vmem:[%s7 + $0xc0] sm:$0xf]
    %v205 = vld [vmem:[%s7 + $0xc4] sm:$0xf]
    %v206 = vld [vmem:[%s7 + $0xc8] sm:$0xf]
    %v207 = vld [vmem:[%s7 + $0xcc] sm:$0xf]
    %v208 = vld [vmem:[%s7 + $0xd0] sm:$0xf]
    %v209 = vld [vmem:[%s7 + $0xd4] sm:$0xf]
    %v210 = vld [vmem:[%s7 + $0xd8] sm:$0xf]
    %v211 = vld [vmem:[%s7 + $0xdc] sm:$0xf]
    %v212 = vld [vmem:[%s7 + $0xe0] sm:$0xf]
    %v213 = vld [vmem:[%s7 + $0xe4] sm:$0xf]
    %v214 = vld [vmem:[%s7 + $0xe8] sm:$0xf]
    %v215 = vld [vmem:[%s7 + $0xec] sm:$0xf]
    %v216 = vld [vmem:[%s7 + $0xf0] sm:$0xf]
    %v217 = vld [vmem:[%s7 + $0xf4] sm:$0xf]
    %v218 = vld [vmem:[%s7 + $0xf8] sm:$0xf]
    %v219 = vld [vmem:[%s7 + $0xfc] sm:$0xf]
    %v220 = vld [vmem:[%s8] sm:$0x1]
    %v221 = vld [vmem:[%s9] sm:$0x1]
    %v222 = vld [vmem:[#allocation2] sm:$0x1]
    %v223 = vld [vmem:[%s0] sm:$0xff]
    %v224 = vld [vmem:[%s1] sm:$0xff]
    %v225 = vld [vmem:[%s1 + $0x8] sm:$0xff]
    %v226 = vpack.c.bf16 %v223, %v223
    %v227 = vpack.c.bf16 %v224, %v224
    %v228 = vpack.c.bf16 %v225, %v225
    %v293 = vunpack.c.l.b16 %v91
    %v294 = vunpack.c.h.b16 %v91
    %v295 = vunpack.c.l.b16 %v92
    %v296 = vunpack.c.h.b16 %v92
    %v297 = vunpack.c.l.b16 %v93
    %v298 = vunpack.c.h.b16 %v93
    %v299 = vunpack.c.l.b16 %v94
    %v300 = vunpack.c.h.b16 %v94
    %v301 = vunpack.c.l.b16 %v95
    %v302 = vunpack.c.h.b16 %v95
    %v303 = vunpack.c.l.b16 %v96
    %v304 = vunpack.c.h.b16 %v96
    %v305 = vunpack.c.l.b16 %v97
    %v306 = vunpack.c.h.b16 %v97
    %v307 = vunpack.c.l.b16 %v98
    %v308 = vunpack.c.h.b16 %v98
    %v309 = vunpack.c.l.b16 %v99
    %v310 = vunpack.c.h.b16 %v99
    %v311 = vunpack.c.l.b16 %v100
    %v312 = vunpack.c.h.b16 %v100
    %v313 = vunpack.c.l.b16 %v101
    %v314 = vunpack.c.h.b16 %v101
    %v315 = vunpack.c.l.b16 %v102
    %v316 = vunpack.c.h.b16 %v102
    %v317 = vunpack.c.l.b16 %v103
    %v318 = vunpack.c.h.b16 %v103
    %v319 = vunpack.c.l.b16 %v104
    %v320 = vunpack.c.h.b16 %v104
    %v321 = vunpack.c.l.b16 %v105
    %v322 = vunpack.c.h.b16 %v105
    %v323 = vunpack.c.l.b16 %v106
    %v324 = vunpack.c.h.b16 %v106
    %v325 = vunpack.c.l.b16 %v107
    %v326 = vunpack.c.h.b16 %v107
    %v327 = vunpack.c.l.b16 %v108
    %v328 = vunpack.c.h.b16 %v108
    %v329 = vunpack.c.l.b16 %v109
    %v330 = vunpack.c.h.b16 %v109
    %v331 = vunpack.c.l.b16 %v110
    %v332 = vunpack.c.h.b16 %v110
    %v333 = vunpack.c.l.b16 %v111
    %v334 = vunpack.c.h.b16 %v111
    %v335 = vunpack.c.l.b16 %v112
    %v336 = vunpack.c.h.b16 %v112
    %v337 = vunpack.c.l.b16 %v113
    %v338 = vunpack.c.h.b16 %v113
    %v339 = vunpack.c.l.b16 %v114
    %v340 = vunpack.c.h.b16 %v114
    %v341 = vunpack.c.l.b16 %v115
    %v342 = vunpack.c.h.b16 %v115
    %v343 = vunpack.c.l.b16 %v116
    %v344 = vunpack.c.h.b16 %v116
    %v345 = vunpack.c.l.b16 %v117
    %v346 = vunpack.c.h.b16 %v117
    %v347 = vunpack.c.l.b16 %v118
    %v348 = vunpack.c.h.b16 %v118
    %v349 = vunpack.c.l.b16 %v119
    %v350 = vunpack.c.h.b16 %v119
    %v351 = vunpack.c.l.b16 %v120
    %v352 = vunpack.c.h.b16 %v120
    %v353 = vunpack.c.l.b16 %v121
    %v354 = vunpack.c.h.b16 %v121
    %v355 = vunpack.c.l.b16 %v122
    %v356 = vunpack.c.h.b16 %v122
    %v357 = vunpack.c.l.b16 %v123
    %v358 = vunpack.c.h.b16 %v123
    %v359 = vunpack.c.l.b16 %v124
    %v360 = vunpack.c.h.b16 %v124
    %v361 = vunpack.c.l.b16 %v125
    %v362 = vunpack.c.h.b16 %v125
    %v363 = vunpack.c.l.b16 %v126
    %v364 = vunpack.c.h.b16 %v126
    %v365 = vunpack.c.l.b16 %v127
    %v366 = vunpack.c.h.b16 %v127
    %v367 = vunpack.c.l.b16 %v128
    %v368 = vunpack.c.h.b16 %v128
    %v369 = vunpack.c.l.b16 %v129
    %v370 = vunpack.c.h.b16 %v129
    %v371 = vunpack.c.l.b16 %v130
    %v372 = vunpack.c.h.b16 %v130
    %v373 = vunpack.c.l.b16 %v131
    %v374 = vunpack.c.h.b16 %v131
    %v375 = vunpack.c.l.b16 %v132
    %v376 = vunpack.c.h.b16 %v132
    %v377 = vunpack.c.l.b16 %v133
    %v378 = vunpack.c.h.b16 %v133
    %v379 = vunpack.c.l.b16 %v134
    %v380 = vunpack.c.h.b16 %v134
    %v381 = vunpack.c.l.b16 %v135
    %v382 = vunpack.c.h.b16 %v135
    %v383 = vunpack.c.l.b16 %v136
    %v384 = vunpack.c.h.b16 %v136
    %v385 = vunpack.c.l.b16 %v137
    %v386 = vunpack.c.h.b16 %v137
    %v387 = vunpack.c.l.b16 %v138
    %v388 = vunpack.c.h.b16 %v138
    %v389 = vunpack.c.l.b16 %v139
    %v390 = vunpack.c.h.b16 %v139
    %v391 = vunpack.c.l.b16 %v140
    %v392 = vunpack.c.h.b16 %v140
    %v393 = vunpack.c.l.b16 %v141
    %v394 = vunpack.c.h.b16 %v141
    %v395 = vunpack.c.l.b16 %v142
    %v396 = vunpack.c.h.b16 %v142
    %v397 = vunpack.c.l.b16 %v143
    %v398 = vunpack.c.h.b16 %v143
    %v399 = vunpack.c.l.b16 %v144
    %v400 = vunpack.c.h.b16 %v144
    %v401 = vunpack.c.l.b16 %v145
    %v402 = vunpack.c.h.b16 %v145
    %v403 = vunpack.c.l.b16 %v146
    %v404 = vunpack.c.h.b16 %v146
    %v405 = vunpack.c.l.b16 %v147
    %v406 = vunpack.c.h.b16 %v147
    %v407 = vunpack.c.l.b16 %v148
    %v408 = vunpack.c.h.b16 %v148
    %v409 = vunpack.c.l.b16 %v149
    %v410 = vunpack.c.h.b16 %v149
    %v411 = vunpack.c.l.b16 %v150
    %v412 = vunpack.c.h.b16 %v150
    %v413 = vunpack.c.l.b16 %v151
    %v414 = vunpack.c.h.b16 %v151
    %v415 = vunpack.c.l.b16 %v152
    %v416 = vunpack.c.h.b16 %v152
    %v417 = vunpack.c.l.b16 %v153
    %v418 = vunpack.c.h.b16 %v153
    %v419 = vunpack.c.l.b16 %v154
    %v420 = vunpack.c.h.b16 %v154
    %v421 = vpack.c.b16 %v297, %v293
    %v422 = vpack.c.b16 %v298, %v294
    %v423 = vpack.c.b16 %v299, %v295
    %v424 = vpack.c.b16 %v300, %v296
    %v425 = vpack.c.b16 %v305, %v301
    %v426 = vpack.c.b16 %v306, %v302
    %v427 = vpack.c.b16 %v307, %v303
    %v428 = vpack.c.b16 %v308, %v304
    %v429 = vpack.c.b16 %v313, %v309
    %v430 = vpack.c.b16 %v314, %v310
    %v431 = vpack.c.b16 %v315, %v311
    %v432 = vpack.c.b16 %v316, %v312
    %v433 = vpack.c.b16 %v321, %v317
    %v434 = vpack.c.b16 %v322, %v318
    %v435 = vpack.c.b16 %v323, %v319
    %v436 = vpack.c.b16 %v324, %v320
    %v437 = vpack.c.b16 %v329, %v325
    %v438 = vpack.c.b16 %v330, %v326
    %v439 = vpack.c.b16 %v331, %v327
    %v440 = vpack.c.b16 %v332, %v328
    %v441 = vpack.c.b16 %v337, %v333
    %v442 = vpack.c.b16 %v338, %v334
    %v443 = vpack.c.b16 %v339, %v335
    %v444 = vpack.c.b16 %v340, %v336
    %v445 = vpack.c.b16 %v345, %v341
    %v446 = vpack.c.b16 %v346, %v342
    %v447 = vpack.c.b16 %v347, %v343
    %v448 = vpack.c.b16 %v348, %v344
    %v449 = vpack.c.b16 %v353, %v349
    %v450 = vpack.c.b16 %v354, %v350
    %v451 = vpack.c.b16 %v355, %v351
    %v452 = vpack.c.b16 %v356, %v352
    %v453 = vpack.c.b16 %v361, %v357
    %v454 = vpack.c.b16 %v362, %v358
    %v455 = vpack.c.b16 %v363, %v359
    %v456 = vpack.c.b16 %v364, %v360
    %v457 = vpack.c.b16 %v369, %v365
    %v458 = vpack.c.b16 %v370, %v366
    %v459 = vpack.c.b16 %v371, %v367
    %v460 = vpack.c.b16 %v372, %v368
    %v461 = vpack.c.b16 %v377, %v373
    %v462 = vpack.c.b16 %v378, %v374
    %v463 = vpack.c.b16 %v379, %v375
    %v464 = vpack.c.b16 %v380, %v376
    %v465 = vpack.c.b16 %v385, %v381
    %v466 = vpack.c.b16 %v386, %v382
    %v467 = vpack.c.b16 %v387, %v383
    %v468 = vpack.c.b16 %v388, %v384
    %v469 = vpack.c.b16 %v393, %v389
    %v470 = vpack.c.b16 %v394, %v390
    %v471 = vpack.c.b16 %v395, %v391
    %v472 = vpack.c.b16 %v396, %v392
    %v473 = vpack.c.b16 %v401, %v397
    %v474 = vpack.c.b16 %v402, %v398
    %v475 = vpack.c.b16 %v403, %v399
    %v476 = vpack.c.b16 %v404, %v400
    %v477 = vpack.c.b16 %v409, %v405
    %v478 = vpack.c.b16 %v410, %v406
    %v479 = vpack.c.b16 %v411, %v407
    %v480 = vpack.c.b16 %v412, %v408
    %v481 = vpack.c.b16 %v417, %v413
    %v482 = vpack.c.b16 %v418, %v414
    %v483 = vpack.c.b16 %v419, %v415
    %v484 = vpack.c.b16 %v420, %v416
    %549 = vmatprep.subr.bf16.mxu0 %v422
    %550 = vmatpush1.bf16.msra.mxu0 %v421
    %551 = vmatprep.subr.bf16.mxu0 %v426
    %552 = vmatpush1.bf16.msra.mxu0 %v425
    %553 = vmatprep.subr.bf16.mxu0 %v430
    %554 = vmatpush1.bf16.msra.mxu0 %v429
    %555 = vmatprep.subr.bf16.mxu0 %v434
    %556 = vmatpush1.bf16.msra.mxu0 %v433
    %557 = vmatprep.subr.bf16.mxu0 %v438
    %558 = vmatpush1.bf16.msra.mxu0 %v437
    %559 = vmatprep.subr.bf16.mxu0 %v442
    %560 = vmatpush1.bf16.msra.mxu0 %v441
    %561 = vmatprep.subr.bf16.mxu0 %v446
    %562 = vmatpush1.bf16.msra.mxu0 %v445
    %563 = vmatprep.subr.bf16.mxu0 %v450
    %564 = vmatpush1.bf16.msra.mxu0 %v449
    %565 = vmatprep.subr.bf16.mxu0 %v454
    %566 = vmatpush1.bf16.msra.mxu0 %v453
    %567 = vmatprep.subr.bf16.mxu0 %v458
    %568 = vmatpush1.bf16.msra.mxu0 %v457
    %569 = vmatprep.subr.bf16.mxu0 %v462
    %570 = vmatpush1.bf16.msra.mxu0 %v461
    %571 = vmatprep.subr.bf16.mxu0 %v466
    %572 = vmatpush1.bf16.msra.mxu0 %v465
    %573 = vmatprep.subr.bf16.mxu0 %v470
    %574 = vmatpush1.bf16.msra.mxu0 %v469
    %575 = vmatprep.subr.bf16.mxu0 %v474
    %576 = vmatpush1.bf16.msra.mxu0 %v473
    %577 = vmatprep.subr.bf16.mxu0 %v478
    %578 = vmatpush1.bf16.msra.mxu0 %v477
    %579 = vmatprep.subr.bf16.mxu0 %v482
    %580 = vmatpush1.bf16.msra.mxu0 %v481
    %581 = vmatprep.mubr.bf16.mxu0 %v228
    %582 = vmatmul.mubr.bf16.gmra.mrb[0].mxu0 %v227
    %v583 = vpop.f32.mrb[0].mxu0
    %v584 = vadd.f32 0.0, %v583
    %v585 = vpop.f32.mrb[0].mxu0
    %v586 = vadd.f32 0.0, %v585
    %v587 = vpop.f32.mrb[0].mxu0
    %v588 = vpop.f32.mrb[0].mxu0
    %589 = vdwg.mxu0
    %590 = vmatprep.subr.bf16.mxu0 %v424
    %591 = vmatpush1.bf16.msra.mxu0 %v423
    %592 = vmatprep.subr.bf16.mxu0 %v428
    %593 = vmatpush1.bf16.msra.mxu0 %v427
    %594 = vmatprep.subr.bf16.mxu0 %v432
    %595 = vmatpush1.bf16.msra.mxu0 %v431
    %596 = vmatprep.subr.bf16.mxu0 %v436
    %597 = vmatpush1.bf16.msra.mxu0 %v435
    %598 = vmatprep.subr.bf16.mxu0 %v440
    %599 = vmatpush1.bf16.msra.mxu0 %v439
    %600 = vmatprep.subr.bf16.mxu0 %v444
    %601 = vmatpush1.bf16.msra.mxu0 %v443
    %602 = vmatprep.subr.bf16.mxu0 %v448
    %603 = vmatpush1.bf16.msra.mxu0 %v447
    %604 = vmatprep.subr.bf16.mxu0 %v452
    %605 = vmatpush1.bf16.msra.mxu0 %v451
    %606 = vmatprep.subr.bf16.mxu0 %v456
    %607 = vmatpush1.bf16.msra.mxu0 %v455
    %608 = vmatprep.subr.bf16.mxu0 %v460
    %609 = vmatpush1.bf16.msra.mxu0 %v459
    %610 = vmatprep.subr.bf16.mxu0 %v464
    %611 = vmatpush1.bf16.msra.mxu0 %v463
    %612 = vmatprep.subr.bf16.mxu0 %v468
    %613 = vmatpush1.bf16.msra.mxu0 %v467
    %614 = vmatprep.subr.bf16.mxu0 %v472
    %615 = vmatpush1.bf16.msra.mxu0 %v471
    %616 = vmatprep.subr.bf16.mxu0 %v476
    %617 = vmatpush1.bf16.msra.mxu0 %v475
    %618 = vmatprep.subr.bf16.mxu0 %v480
    %619 = vmatpush1.bf16.msra.mxu0 %v479
    %620 = vmatprep.subr.bf16.mxu0 %v484
    %621 = vmatpush1.bf16.msra.mxu0 %v483
    %622 = vmatprep.mubr.bf16.mxu0 %v228
    %623 = vmatmul.mubr.bf16.gmra.mrb[0].mxu0 %v227
    %v624 = vpop.f32.mrb[0].mxu0
    %v625 = vadd.f32 0.0, %v624
    %v626 = vpop.f32.mrb[0].mxu0
    %v627 = vadd.f32 0.0, %v626
    %v628 = vpop.f32.mrb[0].mxu0
    %v629 = vpop.f32.mrb[0].mxu0
    %630 = vdwg.mxu0
    %v663 = vunpack.c.l.b16 %v59
    %v664 = vunpack.c.h.b16 %v59
    %v665 = vunpack.c.l.b16 %v60
    %v666 = vunpack.c.h.b16 %v60
    %v667 = vunpack.c.l.b16 %v61
    %v668 = vunpack.c.h.b16 %v61
    %v669 = vunpack.c.l.b16 %v62
    %v670 = vunpack.c.h.b16 %v62
    %v671 = vunpack.c.l.b16 %v63
    %v672 = vunpack.c.h.b16 %v63
    %v673 = vunpack.c.l.b16 %v64
    %v674 = vunpack.c.h.b16 %v64
    %v675 = vunpack.c.l.b16 %v65
    %v676 = vunpack.c.h.b16 %v65
    %v677 = vunpack.c.l.b16 %v66
    %v678 = vunpack.c.h.b16 %v66
    %v679 = vunpack.c.l.b16 %v67
    %v680 = vunpack.c.h.b16 %v67
    %v681 = vunpack.c.l.b16 %v68
    %v682 = vunpack.c.h.b16 %v68
    %v683 = vunpack.c.l.b16 %v69
    %v684 = vunpack.c.h.b16 %v69
    %v685 = vunpack.c.l.b16 %v70
    %v686 = vunpack.c.h.b16 %v70
    %v687 = vunpack.c.l.b16 %v71
    %v688 = vunpack.c.h.b16 %v71
    %v689 = vunpack.c.l.b16 %v72
    %v690 = vunpack.c.h.b16 %v72
    %v691 = vunpack.c.l.b16 %v73
    %v692 = vunpack.c.h.b16 %v73
    %v693 = vunpack.c.l.b16 %v74
    %v694 = vunpack.c.h.b16 %v74
    %v695 = vunpack.c.l.b16 %v75
    %v696 = vunpack.c.h.b16 %v75
    %v697 = vunpack.c.l.b16 %v76
    %v698 = vunpack.c.h.b16 %v76
    %v699 = vunpack.c.l.b16 %v77
    %v700 = vunpack.c.h.b16 %v77
    %v701 = vunpack.c.l.b16 %v78
    %v702 = vunpack.c.h.b16 %v78
    %v703 = vunpack.c.l.b16 %v79
    %v704 = vunpack.c.h.b16 %v79
    %v705 = vunpack.c.l.b16 %v80
    %v706 = vunpack.c.h.b16 %v80
    %v707 = vunpack.c.l.b16 %v81
    %v708 = vunpack.c.h.b16 %v81
    %v709 = vunpack.c.l.b16 %v82
    %v710 = vunpack.c.h.b16 %v82
    %v711 = vunpack.c.l.b16 %v83
    %v712 = vunpack.c.h.b16 %v83
    %v713 = vunpack.c.l.b16 %v84
    %v714 = vunpack.c.h.b16 %v84
    %v715 = vunpack.c.l.b16 %v85
    %v716 = vunpack.c.h.b16 %v85
    %v717 = vunpack.c.l.b16 %v86
    %v718 = vunpack.c.h.b16 %v86
    %v719 = vunpack.c.l.b16 %v87
    %v720 = vunpack.c.h.b16 %v87
    %v721 = vunpack.c.l.b16 %v88
    %v722 = vunpack.c.h.b16 %v88
    %v723 = vunpack.c.l.b16 %v89
    %v724 = vunpack.c.h.b16 %v89
    %v725 = vunpack.c.l.b16 %v90
    %v726 = vunpack.c.h.b16 %v90
    %v727 = vpack.c.b16 %v667, %v663
    %v728 = vpack.c.b16 %v668, %v664
    %v729 = vpack.c.b16 %v669, %v665
    %v730 = vpack.c.b16 %v670, %v666
    %v731 = vpack.c.b16 %v675, %v671
    %v732 = vpack.c.b16 %v676, %v672
    %v733 = vpack.c.b16 %v677, %v673
    %v734 = vpack.c.b16 %v678, %v674
    %v735 = vpack.c.b16 %v683, %v679
    %v736 = vpack.c.b16 %v684, %v680
    %v737 = vpack.c.b16 %v685, %v681
    %v738 = vpack.c.b16 %v686, %v682
    %v739 = vpack.c.b16 %v691, %v687
    %v740 = vpack.c.b16 %v692, %v688
    %v741 = vpack.c.b16 %v693, %v689
    %v742 = vpack.c.b16 %v694, %v690
    %v743 = vpack.c.b16 %v699, %v695
    %v744 = vpack.c.b16 %v700, %v696
    %v745 = vpack.c.b16 %v701, %v697
    %v746 = vpack.c.b16 %v702, %v698
    %v747 = vpack.c.b16 %v707, %v703
    %v748 = vpack.c.b16 %v708, %v704
    %v749 = vpack.c.b16 %v709, %v705
    %v750 = vpack.c.b16 %v710, %v706
    %v751 = vpack.c.b16 %v715, %v711
    %v752 = vpack.c.b16 %v716, %v712
    %v753 = vpack.c.b16 %v717, %v713
    %v754 = vpack.c.b16 %v718, %v714
    %v755 = vpack.c.b16 %v723, %v719
    %v756 = vpack.c.b16 %v724, %v720
    %v757 = vpack.c.b16 %v725, %v721
    %v758 = vpack.c.b16 %v726, %v722
    %791 = vmatprep.subr.bf16.mxu0 %v728
    %792 = vmatpush1.bf16.msra.mxu0 %v727
    %793 = vmatprep.subr.bf16.mxu0 %v732
    %794 = vmatpush1.bf16.msra.mxu0 %v731
    %795 = vmatprep.subr.bf16.mxu0 %v736
    %796 = vmatpush1.bf16.msra.mxu0 %v735
    %797 = vmatprep.subr.bf16.mxu0 %v740
    %798 = vmatpush1.bf16.msra.mxu0 %v739
    %799 = vmatprep.subr.bf16.mxu0 %v744
    %800 = vmatpush1.bf16.msra.mxu0 %v743
    %801 = vmatprep.subr.bf16.mxu0 %v748
    %802 = vmatpush1.bf16.msra.mxu0 %v747
    %803 = vmatprep.subr.bf16.mxu0 %v752
    %804 = vmatpush1.bf16.msra.mxu0 %v751
    %805 = vmatprep.subr.bf16.mxu0 %v756
    %806 = vmatpush1.bf16.msra.mxu0 %v755
    %807 = vmatprep.subr.bf16.mxu0 0
    %808 = vmatpush1.bf16.msra.mxu0 0
    %809 = vmatprep.subr.bf16.mxu0 0
    %810 = vmatpush1.bf16.msra.mxu0 0
    %811 = vmatprep.subr.bf16.mxu0 0
    %812 = vmatpush1.bf16.msra.mxu0 0
    %813 = vmatprep.subr.bf16.mxu0 0
    %814 = vmatpush1.bf16.msra.mxu0 0
    %815 = vmatprep.subr.bf16.mxu0 0
    %816 = vmatpush1.bf16.msra.mxu0 0
    %817 = vmatprep.subr.bf16.mxu0 0
    %818 = vmatpush1.bf16.msra.mxu0 0
    %819 = vmatprep.subr.bf16.mxu0 0
    %820 = vmatpush1.bf16.msra.mxu0 0
    %821 = vmatprep.subr.bf16.mxu0 0
    %822 = vmatpush1.bf16.msra.mxu0 0
    %823 = vmatprep.mubr.bf16.mxu0 0
    %824 = vmatmul.mubr.bf16.gmra.mrb[0].mxu0 %v226
    %v825 = vpop.f32.mrb[0].mxu0
    %v826 = vadd.f32 %v584, %v825
    %v827 = vpop.f32.mrb[0].mxu0
    %v828 = vadd.f32 %v586, %v827
    %v829 = vpop.f32.mrb[0].mxu0
    %v830 = vpop.f32.mrb[0].mxu0
    %831 = vdwg.mxu0
    %832 = vmatprep.subr.bf16.mxu0 %v730
    %833 = vmatpush1.bf16.msra.mxu0 %v729
    %834 = vmatprep.subr.bf16.mxu0 %v734
    %835 = vmatpush1.bf16.msra.mxu0 %v733
    %836 = vmatprep.subr.bf16.mxu0 %v738
    %837 = vmatpush1.bf16.msra.mxu0 %v737
    %838 = vmatprep.subr.bf16.mxu0 %v742
    %839 = vmatpush1.bf16.msra.mxu0 %v741
    %840 = vmatprep.subr.bf16.mxu0 %v746
    %841 = vmatpush1.bf16.msra.mxu0 %v745
    %842 = vmatprep.subr.bf16.mxu0 %v750
    %843 = vmatpush1.bf16.msra.mxu0 %v749
    %844 = vmatprep.subr.bf16.mxu0 %v754
    %845 = vmatpush1.bf16.msra.mxu0 %v753
    %846 = vmatprep.subr.bf16.mxu0 %v758
    %847 = vmatpush1.bf16.msra.mxu0 %v757
    %848 = vmatprep.subr.bf16.mxu0 0
    %849 = vmatpush1.bf16.msra.mxu0 0
    %850 = vmatprep.subr.bf16.mxu0 0
    %851 = vmatpush1.bf16.msra.mxu0 0
    %852 = vmatprep.subr.bf16.mxu0 0
    %853 = vmatpush1.bf16.msra.mxu0 0
    %854 = vmatprep.subr.bf16.mxu0 0
    %855 = vmatpush1.bf16.msra.mxu0 0
    %856 = vmatprep.subr.bf16.mxu0 0
    %857 = vmatpush1.bf16.msra.mxu0 0
    %858 = vmatprep.subr.bf16.mxu0 0
    %859 = vmatpush1.bf16.msra.mxu0 0
    %860 = vmatprep.subr.bf16.mxu0 0
    %861 = vmatpush1.bf16.msra.mxu0 0
    %862 = vmatprep.subr.bf16.mxu0 0
    %863 = vmatpush1.bf16.msra.mxu0 0
    %864 = vmatprep.mubr.bf16.mxu0 0
    %865 = vmatmul.mubr.bf16.gmra.mrb[0].mxu0 %v226
    %v866 = vpop.f32.mrb[0].mxu0
    %v867 = vadd.f32 %v625, %v866
    %v868 = vpop.f32.mrb[0].mxu0
    %v869 = vadd.f32 %v627, %v868
    %v870 = vpop.f32.mrb[0].mxu0
    %v871 = vpop.f32.mrb[0].mxu0
    %872 = vdwg.mxu0
    %v874 = vlaneseq
    %v875 = vshrl.u32 %v874, 7
    %v876 = vsub.s32 0, %v875
    %v877 = vrot.slane %v155, %v876
    %v878 = vlaneseq
    %v879 = vshrl.u32 %v878, 7
    %v880 = vsub.s32 1, %v879
    %v881 = vrot.slane %v155, %v880
    %v882 = vlaneseq
    %v883 = vshrl.u32 %v882, 7
    %v884 = vsub.s32 2, %v883
    %v885 = vrot.slane %v155, %v884
    %v886 = vlaneseq
    %v887 = vshrl.u32 %v886, 7
    %v888 = vsub.s32 3, %v887
    %v889 = vrot.slane %v155, %v888
    %v894 = vadd.f32 %v826, %v877
    %v895 = vadd.f32 %v828, %v881
    %v896 = vadd.f32 %v867, %v885
    %v897 = vadd.f32 %v869, %v889
    %v898 = vmax.f32 %v894, 0.0
    %v899 = vmax.f32 %v895, 0.0
    %v900 = vmax.f32 %v896, 0.0
    %v901 = vmax.f32 %v897, 0.0
    %v902 = vpack.c.bf16 %v898, %v898
    %v903 = vpack.c.bf16 %v899, %v899
    %v904 = vpack.c.bf16 %v900, %v900
    %v905 = vpack.c.bf16 %v901, %v901
    %v907 = vlaneseq
    %v908 = vshrl.u32 %v907, 7
    %v909 = vsub.s32 0, %v908
    %v910 = vrot.slane %v220, %v909
    %v976 = vunpack.c.l.b16 %v156
    %v977 = vunpack.c.l.b16 %v157
    %v978 = vunpack.c.l.b16 %v158
    %v979 = vunpack.c.l.b16 %v159
    %v980 = vunpack.c.l.b16 %v160
    %v981 = vunpack.c.l.b16 %v161
    %v982 = vunpack.c.l.b16 %v162
    %v983 = vunpack.c.l.b16 %v163
    %v984 = vunpack.c.l.b16 %v164
    %v985 = vunpack.c.l.b16 %v165
    %v986 = vunpack.c.l.b16 %v166
    %v987 = vunpack.c.l.b16 %v167
    %v988 = vunpack.c.l.b16 %v168
    %v989 = vunpack.c.l.b16 %v169
    %v990 = vunpack.c.l.b16 %v170
    %v991 = vunpack.c.l.b16 %v171
    %v992 = vunpack.c.l.b16 %v172
    %v993 = vunpack.c.l.b16 %v173
    %v994 = vunpack.c.l.b16 %v174
    %v995 = vunpack.c.l.b16 %v175
    %v996 = vunpack.c.l.b16 %v176
    %v997 = vunpack.c.l.b16 %v177
    %v998 = vunpack.c.l.b16 %v178
    %v999 = vunpack.c.l.b16 %v179
    %v1000 = vunpack.c.l.b16 %v180
    %v1001 = vunpack.c.l.b16 %v181
    %v1002 = vunpack.c.l.b16 %v182
    %v1003 = vunpack.c.l.b16 %v183
    %v1004 = vunpack.c.l.b16 %v184
    %v1005 = vunpack.c.l.b16 %v185
    %v1006 = vunpack.c.l.b16 %v186
    %v1007 = vunpack.c.l.b16 %v187
    %v1008 = vunpack.c.l.b16 %v188
    %v1009 = vunpack.c.l.b16 %v189
    %v1010 = vunpack.c.l.b16 %v190
    %v1011 = vunpack.c.l.b16 %v191
    %v1012 = vunpack.c.l.b16 %v192
    %v1013 = vunpack.c.l.b16 %v193
    %v1014 = vunpack.c.l.b16 %v194
    %v1015 = vunpack.c.l.b16 %v195
    %v1016 = vunpack.c.l.b16 %v196
    %v1017 = vunpack.c.l.b16 %v197
    %v1018 = vunpack.c.l.b16 %v198
    %v1019 = vunpack.c.l.b16 %v199
    %v1020 = vunpack.c.l.b16 %v200
    %v1021 = vunpack.c.l.b16 %v201
    %v1022 = vunpack.c.l.b16 %v202
    %v1023 = vunpack.c.l.b16 %v203
    %v1024 = vunpack.c.l.b16 %v204
    %v1025 = vunpack.c.l.b16 %v205
    %v1026 = vunpack.c.l.b16 %v206
    %v1027 = vunpack.c.l.b16 %v207
    %v1028 = vunpack.c.l.b16 %v208
    %v1029 = vunpack.c.l.b16 %v209
    %v1030 = vunpack.c.l.b16 %v210
    %v1031 = vunpack.c.l.b16 %v211
    %v1032 = vunpack.c.l.b16 %v212
    %v1033 = vunpack.c.l.b16 %v213
    %v1034 = vunpack.c.l.b16 %v214
    %v1035 = vunpack.c.l.b16 %v215
    %v1036 = vunpack.c.l.b16 %v216
    %v1037 = vunpack.c.l.b16 %v217
    %v1038 = vunpack.c.l.b16 %v218
    %v1039 = vunpack.c.l.b16 %v219
    %v1040 = vpack.c.b16 %v977, %v976
    %v1041 = vpack.c.b16 %v979, %v978
    %v1042 = vpack.c.b16 %v981, %v980
    %v1043 = vpack.c.b16 %v983, %v982
    %v1044 = vpack.c.b16 %v985, %v984
    %v1045 = vpack.c.b16 %v987, %v986
    %v1046 = vpack.c.b16 %v989, %v988
    %v1047 = vpack.c.b16 %v991, %v990
    %v1048 = vpack.c.b16 %v993, %v992
    %v1049 = vpack.c.b16 %v995, %v994
    %v1050 = vpack.c.b16 %v997, %v996
    %v1051 = vpack.c.b16 %v999, %v998
    %v1052 = vpack.c.b16 %v1001, %v1000
    %v1053 = vpack.c.b16 %v1003, %v1002
    %v1054 = vpack.c.b16 %v1005, %v1004
    %v1055 = vpack.c.b16 %v1007, %v1006
    %v1056 = vpack.c.b16 %v1009, %v1008
    %v1057 = vpack.c.b16 %v1011, %v1010
    %v1058 = vpack.c.b16 %v1013, %v1012
    %v1059 = vpack.c.b16 %v1015, %v1014
    %v1060 = vpack.c.b16 %v1017, %v1016
    %v1061 = vpack.c.b16 %v1019, %v1018
    %v1062 = vpack.c.b16 %v1021, %v1020
    %v1063 = vpack.c.b16 %v1023, %v1022
    %v1064 = vpack.c.b16 %v1025, %v1024
    %v1065 = vpack.c.b16 %v1027, %v1026
    %v1066 = vpack.c.b16 %v1029, %v1028
    %v1067 = vpack.c.b16 %v1031, %v1030
    %v1068 = vpack.c.b16 %v1033, %v1032
    %v1069 = vpack.c.b16 %v1035, %v1034
    %v1070 = vpack.c.b16 %v1037, %v1036
    %v1071 = vpack.c.b16 %v1039, %v1038
    %1104 = vmatprep.subr.bf16.mxu0 0
    %1105 = vmatpush1.bf16.msra.mxu0 %v1040
    %1106 = vmatprep.subr.bf16.mxu0 0
    %1107 = vmatpush1.bf16.msra.mxu0 %v1041
    %1108 = vmatprep.subr.bf16.mxu0 0
    %1109 = vmatpush1.bf16.msra.mxu0 %v1042
    %1110 = vmatprep.subr.bf16.mxu0 0
    %1111 = vmatpush1.bf16.msra.mxu0 %v1043
    %1112 = vmatprep.subr.bf16.mxu0 0
    %1113 = vmatpush1.bf16.msra.mxu0 %v1044
    %1114 = vmatprep.subr.bf16.mxu0 0
    %1115 = vmatpush1.bf16.msra.mxu0 %v1045
    %1116 = vmatprep.subr.bf16.mxu0 0
    %1117 = vmatpush1.bf16.msra.mxu0 %v1046
    %1118 = vmatprep.subr.bf16.mxu0 0
    %1119 = vmatpush1.bf16.msra.mxu0 %v1047
    %1120 = vmatprep.subr.bf16.mxu0 0
    %1121 = vmatpush1.bf16.msra.mxu0 %v1048
    %1122 = vmatprep.subr.bf16.mxu0 0
    %1123 = vmatpush1.bf16.msra.mxu0 %v1049
    %1124 = vmatprep.subr.bf16.mxu0 0
    %1125 = vmatpush1.bf16.msra.mxu0 %v1050
    %1126 = vmatprep.subr.bf16.mxu0 0
    %1127 = vmatpush1.bf16.msra.mxu0 %v1051
    %1128 = vmatprep.subr.bf16.mxu0 0
    %1129 = vmatpush1.bf16.msra.mxu0 %v1052
    %1130 = vmatprep.subr.bf16.mxu0 0
    %1131 = vmatpush1.bf16.msra.mxu0 %v1053
    %1132 = vmatprep.subr.bf16.mxu0 0
    %1133 = vmatpush1.bf16.msra.mxu0 %v1054
    %1134 = vmatprep.subr.bf16.mxu0 0
    %1135 = vmatpush1.bf16.msra.mxu0 %v1055
    %1136 = vmatprep.mubr.bf16.mxu0 %v903
    %1137 = vmatmul.mubr.bf16.gmra.mrb[0].mxu0 %v902
    %v1138 = vpop.f32.mrb[0].mxu0
    %v1139 = vadd.f32 %v910, %v1138
    %v1140 = vpop.f32.mrb[0].mxu0
    %v1141 = vpop.f32.mrb[0].mxu0
    %v1142 = vpop.f32.mrb[0].mxu0
    %1143 = vdwg.mxu0
    %1144 = vmatprep.subr.bf16.mxu0 0
    %1145 = vmatpush1.bf16.msra.mxu0 %v1056
    %1146 = vmatprep.subr.bf16.mxu0 0
    %1147 = vmatpush1.bf16.msra.mxu0 %v1057
    %1148 = vmatprep.subr.bf16.mxu0 0
    %1149 = vmatpush1.bf16.msra.mxu0 %v1058
    %1150 = vmatprep.subr.bf16.mxu0 0
    %1151 = vmatpush1.bf16.msra.mxu0 %v1059
    %1152 = vmatprep.subr.bf16.mxu0 0
    %1153 = vmatpush1.bf16.msra.mxu0 %v1060
    %1154 = vmatprep.subr.bf16.mxu0 0
    %1155 = vmatpush1.bf16.msra.mxu0 %v1061
    %1156 = vmatprep.subr.bf16.mxu0 0
    %1157 = vmatpush1.bf16.msra.mxu0 %v1062
    %1158 = vmatprep.subr.bf16.mxu0 0
    %1159 = vmatpush1.bf16.msra.mxu0 %v1063
    %1160 = vmatprep.subr.bf16.mxu0 0
    %1161 = vmatpush1.bf16.msra.mxu0 %v1064
    %1162 = vmatprep.subr.bf16.mxu0 0
    %1163 = vmatpush1.bf16.msra.mxu0 %v1065
    %1164 = vmatprep.subr.bf16.mxu0 0
    %1165 = vmatpush1.bf16.msra.mxu0 %v1066
    %1166 = vmatprep.subr.bf16.mxu0 0
    %1167 = vmatpush1.bf16.msra.mxu0 %v1067
    %1168 = vmatprep.subr.bf16.mxu0 0
    %1169 = vmatpush1.bf16.msra.mxu0 %v1068
    %1170 = vmatprep.subr.bf16.mxu0 0
    %1171 = vmatpush1.bf16.msra.mxu0 %v1069
    %1172 = vmatprep.subr.bf16.mxu0 0
    %1173 = vmatpush1.bf16.msra.mxu0 %v1070
    %1174 = vmatprep.subr.bf16.mxu0 0
    %1175 = vmatpush1.bf16.msra.mxu0 %v1071
    %1176 = vmatprep.mubr.bf16.mxu0 %v905
    %1177 = vmatmul.mubr.bf16.gmra.mrb[0].mxu0 %v904
    %v1178 = vpop.f32.mrb[0].mxu0
    %v1179 = vadd.f32 %v1139, %v1178
    %v1180 = vpop.f32.mrb[0].mxu0
    %v1181 = vpop.f32.mrb[0].mxu0
    %v1182 = vpop.f32.mrb[0].mxu0
    %1183 = vdwg.mxu0
    %v1184 = vmax.f32 %v1179, 0.0
    %v1186 = vlaneseq
    %v1187 = vshrl.u32 %v1186, 7
    %v1188 = vsub.s32 0, %v1187
    %v1189 = vrot.slane %v221, %v1188
    %v1191 = vmul.f32 %v1184, %v1189
    %vm1192 = vcmask 523264
    %v1193 = vsel %vm1192, %v1191, 0.0
    %1194 = vadd.xlane.f32.xlu0 %v1193
    %v1195 = vpop.xlane.xlu0 %1194
    %1197 = vset.pattern.permute.xlu0 0
    %1198 = vperm.xlu0 %1197, %v222
    %v1199 = vpop.permute.xlu0 %1198
    %v1201 = vlaneseq
    %v1202 = vshrl.u32 %v1201, 7
    %v1203 = vsub.s32 0, %v1202
    %v1204 = vrot.slane %v1199, %v1203
    %v1205 = vadd.f32 %v1195, %v1204
    %v1207 = vlaneseq
    %v1208 = vand.u32 %v1207, 127
    %v1209 = vlaneseq
    %v1210 = vshrl.u32 %v1209, 7
    %v1211 = vsub.s32 %v1208, %v1210
    %v1212 = vrot.slane %v1205, %v1211
    %vm1214 = vcmask 57344
    %1215 = vst.msk [vmem:[#allocation6] sm:$0x1] %vm1214, %v1212
    %v1216 = vld [vmem:[%s2] sm:$0xff]
    %v1217 = vld [vmem:[%s3] sm:$0xff]
    %v1218 = vld [vmem:[%s3 + $0x8] sm:$0xff]
    %v1219 = vpack.c.bf16 %v1216, %v1216
    %v1220 = vpack.c.bf16 %v1217, %v1217
    %v1221 = vpack.c.bf16 %v1218, %v1218
    %1222 = vmatprep.subr.bf16.mxu0 %v422
    %1223 = vmatpush1.bf16.msra.mxu0 %v421
    %1224 = vmatprep.subr.bf16.mxu0 %v426
    %1225 = vmatpush1.bf16.msra.mxu0 %v425
    %1226 = vmatprep.subr.bf16.mxu0 %v430
    %1227 = vmatpush1.bf16.msra.mxu0 %v429
    %1228 = vmatprep.subr.bf16.mxu0 %v434
    %1229 = vmatpush1.bf16.msra.mxu0 %v433
    %1230 = vmatprep.subr.bf16.mxu0 %v438
    %1231 = vmatpush1.bf16.msra.mxu0 %v437
    %1232 = vmatprep.subr.bf16.mxu0 %v442
    %1233 = vmatpush1.bf16.msra.mxu0 %v441
    %1234 = vmatprep.subr.bf16.mxu0 %v446
    %1235 = vmatpush1.bf16.msra.mxu0 %v445
    %1236 = vmatprep.subr.bf16.mxu0 %v450
    %1237 = vmatpush1.bf16.msra.mxu0 %v449
    %1238 = vmatprep.subr.bf16.mxu0 %v454
    %1239 = vmatpush1.bf16.msra.mxu0 %v453
    %1240 = vmatprep.subr.bf16.mxu0 %v458
    %1241 = vmatpush1.bf16.msra.mxu0 %v457
    %1242 = vmatprep.subr.bf16.mxu0 %v462
    %1243 = vmatpush1.bf16.msra.mxu0 %v461
    %1244 = vmatprep.subr.bf16.mxu0 %v466
    %1245 = vmatpush1.bf16.msra.mxu0 %v465
    %1246 = vmatprep.subr.bf16.mxu0 %v470
    %1247 = vmatpush1.bf16.msra.mxu0 %v469
    %1248 = vmatprep.subr.bf16.mxu0 %v474
    %1249 = vmatpush1.bf16.msra.mxu0 %v473
    %1250 = vmatprep.subr.bf16.mxu0 %v478
    %1251 = vmatpush1.bf16.msra.mxu0 %v477
    %1252 = vmatprep.subr.bf16.mxu0 %v482
    %1253 = vmatpush1.bf16.msra.mxu0 %v481
    %1254 = vmatprep.mubr.bf16.mxu0 %v1221
    %1255 = vmatmul.mubr.bf16.gmra.mrb[0].mxu0 %v1220
    %v1256 = vpop.f32.mrb[0].mxu0
    %v1257 = vadd.f32 0.0, %v1256
    %v1258 = vpop.f32.mrb[0].mxu0
    %v1259 = vadd.f32 0.0, %v1258
    %v1260 = vpop.f32.mrb[0].mxu0
    %v1261 = vpop.f32.mrb[0].mxu0
    %1262 = vdwg.mxu0
    %1263 = vmatprep.subr.bf16.mxu0 %v424
    %1264 = vmatpush1.bf16.msra.mxu0 %v423
    %1265 = vmatprep.subr.bf16.mxu0 %v428
    %1266 = vmatpush1.bf16.msra.mxu0 %v427
    %1267 = vmatprep.subr.bf16.mxu0 %v432
    %1268 = vmatpush1.bf16.msra.mxu0 %v431
    %1269 = vmatprep.subr.bf16.mxu0 %v436
    %1270 = vmatpush1.bf16.msra.mxu0 %v435
    %1271 = vmatprep.subr.bf16.mxu0 %v440
    %1272 = vmatpush1.bf16.msra.mxu0 %v439
    %1273 = vmatprep.subr.bf16.mxu0 %v444
    %1274 = vmatpush1.bf16.msra.mxu0 %v443
    %1275 = vmatprep.subr.bf16.mxu0 %v448
    %1276 = vmatpush1.bf16.msra.mxu0 %v447
    %1277 = vmatprep.subr.bf16.mxu0 %v452
    %1278 = vmatpush1.bf16.msra.mxu0 %v451
    %1279 = vmatprep.subr.bf16.mxu0 %v456
    %1280 = vmatpush1.bf16.msra.mxu0 %v455
    %1281 = vmatprep.subr.bf16.mxu0 %v460
    %1282 = vmatpush1.bf16.msra.mxu0 %v459
    %1283 = vmatprep.subr.bf16.mxu0 %v464
    %1284 = vmatpush1.bf16.msra.mxu0 %v463
    %1285 = vmatprep.subr.bf16.mxu0 %v468
    %1286 = vmatpush1.bf16.msra.mxu0 %v467
    %1287 = vmatprep.subr.bf16.mxu0 %v472
    %1288 = vmatpush1.bf16.msra.mxu0 %v471
    %1289 = vmatprep.subr.bf16.mxu0 %v476
    %1290 = vmatpush1.bf16.msra.mxu0 %v475
    %1291 = vmatprep.subr.bf16.mxu0 %v480
    %1292 = vmatpush1.bf16.msra.mxu0 %v479
    %1293 = vmatprep.subr.bf16.mxu0 %v484
    %1294 = vmatpush1.bf16.msra.mxu0 %v483
    %1295 = vmatprep.mubr.bf16.mxu0 %v1221
    %1296 = vmatmul.mubr.bf16.gmra.mrb[0].mxu0 %v1220
    %v1297 = vpop.f32.mrb[0].mxu0
    %v1298 = vadd.f32 0.0, %v1297
    %v1299 = vpop.f32.mrb[0].mxu0
    %v1300 = vadd.f32 0.0, %v1299
    %v1301 = vpop.f32.mrb[0].mxu0
    %v1302 = vpop.f32.mrb[0].mxu0
    %1303 = vdwg.mxu0
    %1304 = vmatprep.subr.bf16.mxu0 %v728
    %1305 = vmatpush1.bf16.msra.mxu0 %v727
    %1306 = vmatprep.subr.bf16.mxu0 %v732
    %1307 = vmatpush1.bf16.msra.mxu0 %v731
    %1308 = vmatprep.subr.bf16.mxu0 %v736
    %1309 = vmatpush1.bf16.msra.mxu0 %v735
    %1310 = vmatprep.subr.bf16.mxu0 %v740
    %1311 = vmatpush1.bf16.msra.mxu0 %v739
    %1312 = vmatprep.subr.bf16.mxu0 %v744
    %1313 = vmatpush1.bf16.msra.mxu0 %v743
    %1314 = vmatprep.subr.bf16.mxu0 %v748
    %1315 = vmatpush1.bf16.msra.mxu0 %v747
    %1316 = vmatprep.subr.bf16.mxu0 %v752
    %1317 = vmatpush1.bf16.msra.mxu0 %v751
    %1318 = vmatprep.subr.bf16.mxu0 %v756
    %1319 = vmatpush1.bf16.msra.mxu0 %v755
    %1320 = vmatprep.subr.bf16.mxu0 0
    %1321 = vmatpush1.bf16.msra.mxu0 0
    %1322 = vmatprep.subr.bf16.mxu0 0
    %1323 = vmatpush1.bf16.msra.mxu0 0
    %1324 = vmatprep.subr.bf16.mxu0 0
    %1325 = vmatpush1.bf16.msra.mxu0 0
    %1326 = vmatprep.subr.bf16.mxu0 0
    %1327 = vmatpush1.bf16.msra.mxu0 0
    %1328 = vmatprep.subr.bf16.mxu0 0
    %1329 = vmatpush1.bf16.msra.mxu0 0
    %1330 = vmatprep.subr.bf16.mxu0 0
    %1331 = vmatpush1.bf16.msra.mxu0 0
    %1332 = vmatprep.subr.bf16.mxu0 0
    %1333 = vmatpush1.bf16.msra.mxu0 0
    %1334 = vmatprep.subr.bf16.mxu0 0
    %1335 = vmatpush1.bf16.msra.mxu0 0
    %1336 = vmatprep.mubr.bf16.mxu0 0
    %1337 = vmatmul.mubr.bf16.gmra.mrb[0].mxu0 %v1219
    %v1338 = vpop.f32.mrb[0].mxu0
    %v1339 = vadd.f32 %v1257, %v1338
    %v1340 = vpop.f32.mrb[0].mxu0
    %v1341 = vadd.f32 %v1259, %v1340
    %v1342 = vpop.f32.mrb[0].mxu0
    %v1343 = vpop.f32.mrb[0].mxu0
    %1344 = vdwg.mxu0
    %1345 = vmatprep.subr.bf16.mxu0 %v730
    %1346 = vmatpush1.bf16.msra.mxu0 %v729
    %1347 = vmatprep.subr.bf16.mxu0 %v734
    %1348 = vmatpush1.bf16.msra.mxu0 %v733
    %1349 = vmatprep.subr.bf16.mxu0 %v738
    %1350 = vmatpush1.bf16.msra.mxu0 %v737
    %1351 = vmatprep.subr.bf16.mxu0 %v742
    %1352 = vmatpush1.bf16.msra.mxu0 %v741
    %1353 = vmatprep.subr.bf16.mxu0 %v746
    %1354 = vmatpush1.bf16.msra.mxu0 %v745
    %1355 = vmatprep.subr.bf16.mxu0 %v750
    %1356 = vmatpush1.bf16.msra.mxu0 %v749
    %1357 = vmatprep.subr.bf16.mxu0 %v754
    %1358 = vmatpush1.bf16.msra.mxu0 %v753
    %1359 = vmatprep.subr.bf16.mxu0 %v758
    %1360 = vmatpush1.bf16.msra.mxu0 %v757
    %1361 = vmatprep.subr.bf16.mxu0 0
    %1362 = vmatpush1.bf16.msra.mxu0 0
    %1363 = vmatprep.subr.bf16.mxu0 0
    %1364 = vmatpush1.bf16.msra.mxu0 0
    %1365 = vmatprep.subr.bf16.mxu0 0
    %1366 = vmatpush1.bf16.msra.mxu0 0
    %1367 = vmatprep.subr.bf16.mxu0 0
    %1368 = vmatpush1.bf16.msra.mxu0 0
    %1369 = vmatprep.subr.bf16.mxu0 0
    %1370 = vmatpush1.bf16.msra.mxu0 0
    %1371 = vmatprep.subr.bf16.mxu0 0
    %1372 = vmatpush1.bf16.msra.mxu0 0
    %1373 = vmatprep.subr.bf16.mxu0 0
    %1374 = vmatpush1.bf16.msra.mxu0 0
    %1375 = vmatprep.subr.bf16.mxu0 0
    %1376 = vmatpush1.bf16.msra.mxu0 0
    %1377 = vmatprep.mubr.bf16.mxu0 0
    %1378 = vmatmul.mubr.bf16.gmra.mrb[0].mxu0 %v1219
    %v1379 = vpop.f32.mrb[0].mxu0
    %v1380 = vadd.f32 %v1298, %v1379
    %v1381 = vpop.f32.mrb[0].mxu0
    %v1382 = vadd.f32 %v1300, %v1381
    %v1383 = vpop.f32.mrb[0].mxu0
    %v1384 = vpop.f32.mrb[0].mxu0
    %1385 = vdwg.mxu0
    %v1386 = vadd.f32 %v1339, %v877
    %v1387 = vadd.f32 %v1341, %v881
    %v1388 = vadd.f32 %v1380, %v885
    %v1389 = vadd.f32 %v1382, %v889
    %v1390 = vmax.f32 %v1386, 0.0
    %v1391 = vmax.f32 %v1387, 0.0
    %v1392 = vmax.f32 %v1388, 0.0
    %v1393 = vmax.f32 %v1389, 0.0
    %v1394 = vpack.c.bf16 %v1390, %v1390
    %v1395 = vpack.c.bf16 %v1391, %v1391
    %v1396 = vpack.c.bf16 %v1392, %v1392
    %v1397 = vpack.c.bf16 %v1393, %v1393
    %1398 = vmatprep.subr.bf16.mxu0 0
    %1399 = vmatpush1.bf16.msra.mxu0 %v1040
    %1400 = vmatprep.subr.bf16.mxu0 0
    %1401 = vmatpush1.bf16.msra.mxu0 %v1041
    %1402 = vmatprep.subr.bf16.mxu0 0
    %1403 = vmatpush1.bf16.msra.mxu0 %v1042
    %1404 = vmatprep.subr.bf16.mxu0 0
    %1405 = vmatpush1.bf16.msra.mxu0 %v1043
    %1406 = vmatprep.subr.bf16.mxu0 0
    %1407 = vmatpush1.bf16.msra.mxu0 %v1044
    %1408 = vmatprep.subr.bf16.mxu0 0
    %1409 = vmatpush1.bf16.msra.mxu0 %v1045
    %1410 = vmatprep.subr.bf16.mxu0 0
    %1411 = vmatpush1.bf16.msra.mxu0 %v1046
    %1412 = vmatprep.subr.bf16.mxu0 0
    %1413 = vmatpush1.bf16.msra.mxu0 %v1047
    %1414 = vmatprep.subr.bf16.mxu0 0
    %1415 = vmatpush1.bf16.msra.mxu0 %v1048
    %1416 = vmatprep.subr.bf16.mxu0 0
    %1417 = vmatpush1.bf16.msra.mxu0 %v1049
    %1418 = vmatprep.subr.bf16.mxu0 0
    %1419 = vmatpush1.bf16.msra.mxu0 %v1050
    %1420 = vmatprep.subr.bf16.mxu0 0
    %1421 = vmatpush1.bf16.msra.mxu0 %v1051
    %1422 = vmatprep.subr.bf16.mxu0 0
    %1423 = vmatpush1.bf16.msra.mxu0 %v1052
    %1424 = vmatprep.subr.bf16.mxu0 0
    %1425 = vmatpush1.bf16.msra.mxu0 %v1053
    %1426 = vmatprep.subr.bf16.mxu0 0
    %1427 = vmatpush1.bf16.msra.mxu0 %v1054
    %1428 = vmatprep.subr.bf16.mxu0 0
    %1429 = vmatpush1.bf16.msra.mxu0 %v1055
    %1430 = vmatprep.mubr.bf16.mxu0 %v1395
    %1431 = vmatmul.mubr.bf16.gmra.mrb[0].mxu0 %v1394
    %v1432 = vpop.f32.mrb[0].mxu0
    %v1433 = vadd.f32 %v910, %v1432
    %v1434 = vpop.f32.mrb[0].mxu0
    %v1435 = vpop.f32.mrb[0].mxu0
    %v1436 = vpop.f32.mrb[0].mxu0
    %1437 = vdwg.mxu0
    %1438 = vmatprep.subr.bf16.mxu0 0
    %1439 = vmatpush1.bf16.msra.mxu0 %v1056
    %1440 = vmatprep.subr.bf16.mxu0 0
    %1441 = vmatpush1.bf16.msra.mxu0 %v1057
    %1442 = vmatprep.subr.bf16.mxu0 0
    %1443 = vmatpush1.bf16.msra.mxu0 %v1058
    %1444 = vmatprep.subr.bf16.mxu0 0
    %1445 = vmatpush1.bf16.msra.mxu0 %v1059
    %1446 = vmatprep.subr.bf16.mxu0 0
    %1447 = vmatpush1.bf16.msra.mxu0 %v1060
    %1448 = vmatprep.subr.bf16.mxu0 0
    %1449 = vmatpush1.bf16.msra.mxu0 %v1061
    %1450 = vmatprep.subr.bf16.mxu0 0
    %1451 = vmatpush1.bf16.msra.mxu0 %v1062
    %1452 = vmatprep.subr.bf16.mxu0 0
    %1453 = vmatpush1.bf16.msra.mxu0 %v1063
    %1454 = vmatprep.subr.bf16.mxu0 0
    %1455 = vmatpush1.bf16.msra.mxu0 %v1064
    %1456 = vmatprep.subr.bf16.mxu0 0
    %1457 = vmatpush1.bf16.msra.mxu0 %v1065
    %1458 = vmatprep.subr.bf16.mxu0 0
    %1459 = vmatpush1.bf16.msra.mxu0 %v1066
    %1460 = vmatprep.subr.bf16.mxu0 0
    %1461 = vmatpush1.bf16.msra.mxu0 %v1067
    %1462 = vmatprep.subr.bf16.mxu0 0
    %1463 = vmatpush1.bf16.msra.mxu0 %v1068
    %1464 = vmatprep.subr.bf16.mxu0 0
    %1465 = vmatpush1.bf16.msra.mxu0 %v1069
    %1466 = vmatprep.subr.bf16.mxu0 0
    %1467 = vmatpush1.bf16.msra.mxu0 %v1070
    %1468 = vmatprep.subr.bf16.mxu0 0
    %1469 = vmatpush1.bf16.msra.mxu0 %v1071
    %1470 = vmatprep.mubr.bf16.mxu0 %v1397
    %1471 = vmatmul.mubr.bf16.gmra.mrb[0].mxu0 %v1396
    %v1472 = vpop.f32.mrb[0].mxu0
    %v1473 = vadd.f32 %v1433, %v1472
    %v1474 = vpop.f32.mrb[0].mxu0
    %v1475 = vpop.f32.mrb[0].mxu0
    %v1476 = vpop.f32.mrb[0].mxu0
    %1477 = vdwg.mxu0
    %v1478 = vmax.f32 %v1473, 0.0
    %v1479 = vmul.f32 %v1478, %v1189
    %v1480 = vsel %vm1192, %v1479, 0.0
    %1481 = vadd.xlane.f32.xlu0 %v1480
    %v1482 = vpop.xlane.xlu0 %1481
    %v1483 = vadd.f32 %v1482, %v1204
    %v1485 = vlaneseq
    %v1486 = vshrl.u32 %v1485, 7
    %v1487 = vsub.s32 %v1208, %v1486
    %v1488 = vrot.slane %v1483, %v1487
    %1490 = vst.msk [vmem:[#allocation7] sm:$0x1] %vm1214, %v1488
    // Predicated region
    $region50: #{tpu_custom_call.1} parent=1 // pred_check
      _
    $region51: #{tpu_custom_call.1} parent=1 // pred_check_branch
      %1492 = sbr.rel (0) target = $region53
    $region52: #{tpu_custom_call.1} parent=1 // pred_region
      %s1494 = ssub.s32 16, 16
      %1495 = vsyncadd [#allocation5], %s1494
      %s1497 = sshll.u32 [#allocation6], 4
      %s1498 = int_to_ptr.vmem [resolvable:$true] %s1497
      %1500 = dma.vmem_to_hbm [thread:$0]  %s1498, 16, %s11, [#allocation5]
    $region53: #{tpu_custom_call.1} parent=1 // pred_fallthru
      _
    // Predicated region
    $region54: #{tpu_custom_call.1} parent=1 // pred_check
      _
    $region55: #{tpu_custom_call.1} parent=1 // pred_check_branch
      %1502 = sbr.rel (0) target = $region57
    $region56: #{tpu_custom_call.1} parent=1 // pred_region
      %s1504 = ssub.s32 16, 16
      %1505 = vsyncadd [#allocation8], %s1504
      %s1507 = sshll.u32 [#allocation7], 4
      %s1508 = int_to_ptr.vmem [resolvable:$true] %s1507
      %1510 = dma.vmem_to_hbm [thread:$0]  %s1508, 16, %s12, [#allocation8]
    $region57: #{tpu_custom_call.1} parent=1 // pred_fallthru
      _
    // Predicated region
    $region58: #{tpu_custom_call.1} parent=1 // pred_check
      _
    $region59: #{tpu_custom_call.1} parent=1 // pred_check_branch
      %1512 = sbr.rel (0) target = $region61
    $region60: #{tpu_custom_call.1} parent=1 // pred_region
      %1513 = dma.done [#allocation5], 16
    $region61: #{tpu_custom_call.1} parent=1 // pred_fallthru
      _
    // Predicated region
    $region62: #{tpu_custom_call.1} parent=1 // pred_check
      _
    $region63: #{tpu_custom_call.1} parent=1 // pred_check_branch
      %1515 = sbr.rel (0) target = $region65
    $region64: #{tpu_custom_call.1} parent=1 // pred_region
      %1516 = dma.done [#allocation8], 16
    $region65: #{tpu_custom_call.1} parent=1 // pred_fallthru
      _
    %1517 = vsyncpa [#allocation4], 1
    %1518 = vsyncpa [#allocation5], 1
    %1519 = vsyncpa [#allocation8], 1

</llo_original>
